<compile_context>
chip_gen: v7x
topology: tpu7x:2x2x1
jax: 0.10.0
libtpu: 0.0.40
codegen_flags: <defaults>
</compile_context>

<pallas_src>
import jax
import jax.numpy as jnp
from jax import lax
from jax.experimental import pallas as pl
from jax.experimental.pallas import tpu as pltpu

HIDDEN = 32      # ObsPointNet hidden width
EDGES = 4        # robot convex polygon edge count (rectangle)
LN_EPS = 1e-5

IN_ROWS = 16                 # input slab rows (10 used, padded to 16)
MEAN_ROW = 0                 # closed-form LN mean coefficients
SQ_ROW = 8                   # closed-form LN E[z1^2] coefficients
Z1_OFF = 16                  # [w1 | b1] rows
GP_OFF = Z1_OFF + HIDDEN     # [G | -h] rows
LHS_ROWS = GP_OFF + EDGES    # 52: fused first-matmul LHS rows
WA_ROWS = 56                 # f32 weight slab rows
WB_ROWS = 3 * HIDDEN + 8     # activation-dtype weight slab rows (w2..w5)


def _dune_kernel(in_ref, wa_ref, wb_ref, dist_ref):
    """Single-invocation DUNE kernel (no grid).

    in_ref  : VMEM (16, L)  f32  rows: px, py, vx, vy, cos, sin, tx, ty, t*dt, 1
                                 (step-major lane-dense packing of (t, n) pairs)
    wa_ref  : VMEM (56,128) f32  fused first-matmul LHS + LN coeffs + biases
    wb_ref  : VMEM (104,128) f32/bf16  w2, w3, w4, w5 (compute dtype)
    dist_ref: VMEM (1, L)   f32  per-(step, point) distance, lane-dense
    """
    H, E = HIDDEN, EDGES

    px = in_ref[0:1, :]
    py = in_ref[1:2, :]
    vx = in_ref[2:3, :]
    vy = in_ref[3:4, :]
    ct = in_ref[4:5, :]
    st = in_ref[5:6, :]
    tx = in_ref[6:7, :]
    ty = in_ref[7:8, :]
    tf = in_ref[8:9, :]
    one = in_ref[9:10, :]

    # Propagate points along their velocities and rotate/translate into the
    # robot frame of each step -- all full-lane-width VPU ops, no scratch.
    dx = px + vx * tf - tx
    dy = py + vy * tf - ty
    prx = ct * dx + st * dy
    pry = ct * dy - st * dx

    # Fused first matmul: one MXU call produces z1 (= w1 p + b1), gp (= G p - h)
    # and the closed-form LayerNorm moments (linear/quadratic form in p).
    pr_aug = jnp.concatenate(
        [prx, pry, one, prx * prx, pry * pry, prx * pry], axis=0)      # (6, L)
    lhs = wa_ref[0:LHS_ROWS, 0:6]                                      # (52, 6)
    fused = jnp.dot(lhs, pr_aug, preferred_element_type=jnp.float32)   # (52, L)

    ln_mean = fused[MEAN_ROW:MEAN_ROW + 1, :]
    ln_sq = fused[SQ_ROW:SQ_ROW + 1, :]
    z1 = fused[Z1_OFF:Z1_OFF + H, :]
    gp = fused[GP_OFF:GP_OFF + E, :]

    # LayerNorm in f32 with closed-form moments (no sublane reduction trees).
    ln_var = ln_sq - ln_mean * ln_mean
    z1n = (z1 - ln_mean) * lax.rsqrt(ln_var + LN_EPS)

    g_ln = wa_ref[0:H, 8:9]
    bt_ln = wa_ref[0:H, 9:10]
    b2 = wa_ref[0:H, 10:11]
    b3 = wa_ref[0:H, 11:12]
    b4 = wa_ref[0:H, 12:13]
    b5 = wa_ref[0:E, 13:14]

    cd = wb_ref.dtype        # bf16 on v6e/v7x, f32 on v5e
    w2 = wb_ref[0:H, 0:H]
    w3 = wb_ref[H:2 * H, 0:H]
    w4 = wb_ref[2 * H:3 * H, 0:H]
    w5 = wb_ref[3 * H:3 * H + E, 0:H]

    # ObsPointNet MLP: LN+Tanh -> (Linear+Tanh)x2 -> Linear+ReLU -> Linear+ReLU
    # Activations / tanh in the compute dtype; accumulation stays f32.
    h1 = jnp.tanh((z1n * g_ln + bt_ln).astype(cd))
    h2 = jnp.tanh((jnp.dot(w2, h1, preferred_element_type=jnp.float32) + b2).astype(cd))
    h3 = jnp.tanh((jnp.dot(w3, h2, preferred_element_type=jnp.float32) + b3).astype(cd))
    h4 = jnp.maximum(jnp.dot(w4, h3, preferred_element_type=jnp.float32) + b4,
                     0.0).astype(cd)
    mu = jnp.maximum(jnp.dot(w5, h4, preferred_element_type=jnp.float32) + b5,
                     0.0)                                              # (E, L) f32

    # distance d = mu^T (G p - h), kept in f32.
    dist_ref[...] = jnp.sum(mu * gp, axis=0, keepdims=True)            # (1, L)


def pack_weight_slabs(weights, use_bf16=False):
    """Init-time (hoisted) packing of the 14 DUNE parameter tensors.

    Returns (wa, wb):
      wa (56, 128) f32 : fused first-matmul LHS (mean/E[x^2] coeff rows, w1|b1,
                         G|-h) plus g_ln, bt_ln, b2..b5 columns.
      wb (104, 128) f32 or bf16 : w2, w3, w4, w5 in the activation dtype.
    """
    (w1, b1, g_ln, bt_ln, w2, b2, w3, b3, w4, b4, w5, b5, G, h) = [
        jnp.asarray(w, jnp.float32) for w in weights]
    H, E = HIDDEN, EDGES

    # Closed-form LayerNorm moments: z1 = w1 p + b1 is affine in (prx, pry, 1),
    # so mean(z1) and mean(z1^2) over the 32 channels are a linear / quadratic
    # form in (prx, pry, 1, prx^2, pry^2, prx*pry).
    wx, wy, bb = w1[:, 0], w1[:, 1], b1[:, 0]
    a0, a1, a2 = jnp.mean(wx), jnp.mean(wy), jnp.mean(bb)
    cxx, cyy, cxy = jnp.mean(wx * wx), jnp.mean(wy * wy), jnp.mean(wx * wy)
    cxb, cyb, cbb = jnp.mean(wx * bb), jnp.mean(wy * bb), jnp.mean(bb * bb)
    zero = jnp.zeros((), jnp.float32)
    mean_row = jnp.stack([a0, a1, a2, zero, zero, zero])
    sq_row = jnp.stack([2.0 * cxb, 2.0 * cyb, cbb, cxx, cyy, 2.0 * cxy])

    wa = jnp.zeros((WA_ROWS, 128), jnp.float32)
    wa = wa.at[MEAN_ROW, 0:6].set(mean_row)
    wa = wa.at[SQ_ROW, 0:6].set(sq_row)
    wa = wa.at[Z1_OFF:Z1_OFF + H, 0:2].set(w1)
    wa = wa.at[Z1_OFF:Z1_OFF + H, 2].set(b1[:, 0])
    wa = wa.at[GP_OFF:GP_OFF + E, 0:2].set(G)
    wa = wa.at[GP_OFF:GP_OFF + E, 2].set(-h[:, 0])
    wa = wa.at[0:H, 8].set(g_ln[:, 0])
    wa = wa.at[0:H, 9].set(bt_ln[:, 0])
    wa = wa.at[0:H, 10].set(b2[:, 0])
    wa = wa.at[0:H, 11].set(b3[:, 0])
    wa = wa.at[0:H, 12].set(b4[:, 0])
    wa = wa.at[0:E, 13].set(b5[:, 0])

    wb = jnp.zeros((WB_ROWS, 128), jnp.float32)
    wb = wb.at[0:H, 0:H].set(w2)
    wb = wb.at[H:2 * H, 0:H].set(w3)
    wb = wb.at[2 * H:3 * H, 0:H].set(w4)
    wb = wb.at[3 * H:3 * H + E, 0:H].set(w5)
    wb = wb.astype(jnp.bfloat16 if use_bf16 else jnp.float32)
    return wa, wb


def build_input_slab(nom_ref, points, velocities, dt):
    """Lane-dense (16, L) input slab, step-major over (t, n) pairs."""
    T = nom_ref.shape[1]
    N = points.shape[1]
    nv = T * N
    L = max(128, ((nv + 127) // 128) * 128)
    pts = points.astype(jnp.float32)
    vel = velocities.astype(jnp.float32)
    nom = nom_ref.astype(jnp.float32)
    tf = jnp.repeat(jnp.arange(T, dtype=jnp.float32) * jnp.float32(dt), N)
    rows = jnp.stack([
        jnp.tile(pts[0], T), jnp.tile(pts[1], T),
        jnp.tile(vel[0], T), jnp.tile(vel[1], T),
        jnp.repeat(nom[0], N), jnp.repeat(nom[1], N),
        jnp.repeat(nom[2], N), jnp.repeat(nom[3], N),
        tf,
        jnp.ones((nv,), jnp.float32),
    ], axis=0)                                                # (10, T*N)
    slab = jnp.pad(rows, ((0, IN_ROWS - 10), (0, L - nv)))    # (16, L)
    return slab, L


def dune_distances(nom_ref, points, velocities, weight_slabs, dt):
    """nom_ref (4,T) [cos,sin,x,y], points/velocities (2,N). Returns (T, N)."""
    T = nom_ref.shape[1]
    N = points.shape[1]
    wa, wb = weight_slabs
    slab, L = build_input_slab(nom_ref, points, velocities, dt)

    H, E = HIDDEN, EDGES
    cost = pl.CostEstimate(
        flops=2 * L * (LHS_ROWS * 6 + 3 * H * H + E * H) + 20 * L,
        transcendentals=L * (3 * H + 1),
        bytes_accessed=4 * IN_ROWS * L + 4 * wa.size
        + int(wb.size) * int(wb.dtype.itemsize) + 4 * L,
    )

    vmem = pl.BlockSpec(memory_space=pltpu.MemorySpace.VMEM)
    dist = pl.pallas_call(
        _dune_kernel,
        out_shape=jax.ShapeDtypeStruct((1, L), jnp.float32),
        in_specs=[vmem, vmem, vmem],
        out_specs=vmem,
        cost_estimate=cost,
    )(slab, wa, wb)
    return dist[0, :T * N].reshape(T, N)


def dune_distances_ref(nom_ref, points, velocities, weights, dt):
    """Pure-JAX f32 reference for the correctness check."""
    (w1, b1, g_ln, bt_ln, w2, b2, w3, b3, w4, b4, w5, b5, G, h) = weights
    T = nom_ref.shape[1]
    outs = []
    with jax.default_matmul_precision("highest"):
        for t in range(T):
            ct, st, tx, ty = nom_ref[0, t], nom_ref[1, t], nom_ref[2, t], nom_ref[3, t]
            p = points + velocities * (jnp.float32(t) * jnp.float32(dt))
            dx, dy = p[0:1] - tx, p[1:2] - ty
            pr = jnp.concatenate([ct * dx + st * dy, ct * dy - st * dx], axis=0)
            z1 = w1 @ pr + b1
            m = jnp.mean(z1, axis=0, keepdims=True)
            v = jnp.mean((z1 - m) ** 2, axis=0, keepdims=True)
            h1 = jnp.tanh((z1 - m) / jnp.sqrt(v + LN_EPS) * g_ln + bt_ln)
            h2 = jnp.tanh(w2 @ h1 + b2)
            h3 = jnp.tanh(w3 @ h2 + b3)
            h4 = jnp.maximum(w4 @ h3 + b4, 0.0)
            mu = jnp.maximum(w5 @ h4 + b5, 0.0)
            gp = G @ pr - h
            outs.append(jnp.sum(mu * gp, axis=0))
    return jnp.stack(outs, axis=0)


def make_weights(key):
    ks = jax.random.split(key, 8)
    scale = 0.5
    w1 = scale * jax.random.normal(ks[0], (HIDDEN, 2), jnp.float32)
    b1 = jnp.zeros((HIDDEN, 1), jnp.float32)
    g_ln = jnp.ones((HIDDEN, 1), jnp.float32)
    bt_ln = jnp.zeros((HIDDEN, 1), jnp.float32)
    w2 = scale * jax.random.normal(ks[1], (HIDDEN, HIDDEN), jnp.float32)
    b2 = 0.01 * jnp.ones((HIDDEN, 1), jnp.float32)
    w3 = scale * jax.random.normal(ks[2], (HIDDEN, HIDDEN), jnp.float32)
    b3 = 0.01 * jnp.ones((HIDDEN, 1), jnp.float32)
    w4 = scale * jax.random.normal(ks[3], (HIDDEN, HIDDEN), jnp.float32)
    b4 = 0.01 * jnp.ones((HIDDEN, 1), jnp.float32)
    w5 = scale * jax.random.normal(ks[4], (EDGES, HIDDEN), jnp.float32)
    b5 = 0.01 * jnp.ones((EDGES, 1), jnp.float32)
    # robot rectangle: |x| <= L/2, |y| <= W/2  ->  G p <= h
    L, W = 4.6, 1.6
    G = jnp.array([[1.0, 0.0], [0.0, 1.0], [-1.0, 0.0], [0.0, -1.0]], jnp.float32)
    h = jnp.array([[L / 2], [W / 2], [L / 2], [W / 2]], jnp.float32)
    return (w1, b1, g_ln, bt_ln, w2, b2, w3, b3, w4, b4, w5, b5, G, h)


def pick_use_bf16():
    """bf16 VPU/EUP path exists on v6e / v7x; keep f32 on v5e and older."""
    try:
        kind = jax.devices()[0].device_kind.lower()
    except Exception:
        return False
    return ("v6" in kind) or ("v7" in kind) or ("7x" in kind)


def neupan_forward(state, points, velocities, weight_slabs, goal,
                   T=10, dt=0.1, ref_speed=4.0, collision_threshold=0.1):
    """state (3,1), points (2,N), velocities (2,N). Returns (action (2,1), info)."""
    # --- InitialPath.generate_nom_ref_state (simplified straight-line ref) ---
    pos = state[:2, 0]
    to_goal = goal[:2] - pos
    dist_goal = jnp.linalg.norm(to_goal)
    heading = jnp.arctan2(to_goal[1], to_goal[0])
    steps = jnp.arange(T, dtype=jnp.float32)
    nom_x = pos[0] + jnp.cos(heading) * ref_speed * dt * steps
    nom_y = pos[1] + jnp.sin(heading) * ref_speed * dt * steps
    nom_theta = jnp.full((T,), heading, jnp.float32)
    nom_ref = jnp.stack([jnp.cos(nom_theta), jnp.sin(nom_theta), nom_x, nom_y],
                        axis=0).astype(jnp.float32)              # (4, T)
    nom_s = jnp.stack([nom_x, nom_y, nom_theta], axis=0)         # (3, T)
    nom_u = jnp.stack([jnp.full((T,), ref_speed, jnp.float32),
                       jnp.zeros((T,), jnp.float32)], axis=0)    # (2, T)

    # --- DUNE hot path (single Pallas kernel invocation, lane-dense) ---
    dist = dune_distances(nom_ref, points, velocities, weight_slabs, dt)  # (T, N)
    min_distance = jnp.min(dist)

    # TODO(synk): NRMP layer is a cvxpylayers QP solve (proximal MPC step); no
    # clean Pallas equivalent, so the nominal plan is returned as the optimum.
    opt_state = nom_s
    opt_vel = nom_u

    arrive = dist_goal < ref_speed * dt
    stop = min_distance < collision_threshold
    action = jnp.where(jnp.logical_or(stop, arrive),
                       jnp.zeros((2, 1), jnp.float32), opt_vel[:, 0:1])

    info = {
        "stop": stop, "arrive": arrive,
        "state_tensor": opt_state, "vel_tensor": opt_vel,
        "distance_tensor": dist, "min_distance": min_distance,
        "ref_state_tensor": nom_s,
    }
    return action, info


if __name__ == "__main__":
    key = jax.random.PRNGKey(0)
    k_w, k_p, k_v = jax.random.split(key, 3)
    weights = make_weights(k_w)

    T, dt, ref_speed = 10, 0.1, 4.0
    use_bf16 = pick_use_bf16()
    # Weight packing hoisted to init -- built once, reused every control tick.
    slabs = pack_weight_slabs(weights, use_bf16=use_bf16)
    slabs_f32 = pack_weight_slabs(weights, use_bf16=False) if use_bf16 else slabs

    state = jnp.array([[0.0], [0.0], [0.3]], jnp.float32)              # (3, 1)
    goal = jnp.array([20.0, 5.0, 0.0], jnp.float32)
    N = 50
    points = 3.0 + 2.0 * jax.random.normal(k_p, (2, N), jnp.float32)   # (2, N)
    velocities = 0.2 * jax.random.normal(k_v, (2, N), jnp.float32)     # (2, N)

    action, info = neupan_forward(state, points, velocities, slabs, goal,
                                  T=T, dt=dt, ref_speed=ref_speed)
    action = jax.block_until_ready(action)

    # Correctness check against a pure-JAX f32 reference, with a non-trivial
    # rotation/translation so the robot-frame transform path is exercised.
    theta_dbg = jnp.linspace(0.1, 0.9, T).astype(jnp.float32)
    nom_ref_dbg = jnp.stack([jnp.cos(theta_dbg), jnp.sin(theta_dbg),
                             jnp.linspace(0.0, 2.0, T),
                             jnp.linspace(0.0, 1.0, T)], axis=0).astype(jnp.float32)
    d_ref = dune_distances_ref(nom_ref_dbg, points, velocities, weights, dt)
    d_f32 = dune_distances(nom_ref_dbg, points, velocities, slabs_f32, dt)
    d_ref, d_f32 = jax.block_until_ready((d_ref, d_f32))
    assert jnp.allclose(d_f32, d_ref, atol=2e-3, rtol=2e-3), "f32 kernel mismatch"
    assert jnp.allclose(jnp.min(d_f32, axis=1), jnp.min(d_ref, axis=1),
                        atol=2e-3, rtol=2e-3), "f32 kernel min mismatch"

    if use_bf16:
        # bf16 activations on v6e/v7x: only a decision-level sanity check, as
        # bf16 rounding through the MLP cannot meet the f32 tolerance.
        d_bf = jax.block_until_ready(
            dune_distances(nom_ref_dbg, points, velocities, slabs, dt))
        assert bool(jnp.all(jnp.isfinite(d_bf))), "bf16 kernel non-finite"
        assert jnp.allclose(d_bf, d_ref, atol=3.0, rtol=0.25), "bf16 kernel diverged"

    print("KERNEL_OK")
</pallas_src>

<mosaic_0001>
module attributes {stable_mosaic.version = 11 : i64} {
  func.func @_dune_kernel(%arg0: memref<16x512xf32, #tpu.memory_space<vmem>>, %arg1: memref<56x128xf32, #tpu.memory_space<vmem>>, %arg2: memref<104x128xf32, #tpu.memory_space<vmem>>, %arg3: memref<1x512xf32, #tpu.memory_space<vmem>>) attributes {dimension_semantics = [], scalar_prefetch = 0 : i64, scratch_operands = 0 : i64, tpu.core_type = #tpu.core_type<tc>} {
    %c0 = arith.constant 0 : index
    %c0_0 = arith.constant 0 : index
    %0 = vector.load %arg0[%c0, %c0_0] : memref<16x512xf32, #tpu.memory_space<vmem>>, vector<1x512xf32>
    %c1 = arith.constant 1 : index
    %c0_1 = arith.constant 0 : index
    %1 = vector.load %arg0[%c1, %c0_1] : memref<16x512xf32, #tpu.memory_space<vmem>>, vector<1x512xf32>
    %c2 = arith.constant 2 : index
    %c0_2 = arith.constant 0 : index
    %2 = vector.load %arg0[%c2, %c0_2] : memref<16x512xf32, #tpu.memory_space<vmem>>, vector<1x512xf32>
    %c3 = arith.constant 3 : index
    %c0_3 = arith.constant 0 : index
    %3 = vector.load %arg0[%c3, %c0_3] : memref<16x512xf32, #tpu.memory_space<vmem>>, vector<1x512xf32>
    %c4 = arith.constant 4 : index
    %c0_4 = arith.constant 0 : index
    %4 = vector.load %arg0[%c4, %c0_4] : memref<16x512xf32, #tpu.memory_space<vmem>>, vector<1x512xf32>
    %c5 = arith.constant 5 : index
    %c0_5 = arith.constant 0 : index
    %5 = vector.load %arg0[%c5, %c0_5] : memref<16x512xf32, #tpu.memory_space<vmem>>, vector<1x512xf32>
    %c6 = arith.constant 6 : index
    %c0_6 = arith.constant 0 : index
    %6 = vector.load %arg0[%c6, %c0_6] : memref<16x512xf32, #tpu.memory_space<vmem>>, vector<1x512xf32>
    %c7 = arith.constant 7 : index
    %c0_7 = arith.constant 0 : index
    %7 = vector.load %arg0[%c7, %c0_7] : memref<16x512xf32, #tpu.memory_space<vmem>>, vector<1x512xf32>
    %c8 = arith.constant 8 : index
    %c0_8 = arith.constant 0 : index
    %8 = vector.load %arg0[%c8, %c0_8] : memref<16x512xf32, #tpu.memory_space<vmem>>, vector<1x512xf32>
    %c9 = arith.constant 9 : index
    %c0_9 = arith.constant 0 : index
    %9 = vector.load %arg0[%c9, %c0_9] : memref<16x512xf32, #tpu.memory_space<vmem>>, vector<1x512xf32>
    %10 = arith.mulf %2, %8 : vector<1x512xf32>
    %11 = arith.addf %0, %10 : vector<1x512xf32>
    %12 = arith.subf %11, %6 : vector<1x512xf32>
    %13 = arith.mulf %3, %8 : vector<1x512xf32>
    %14 = arith.addf %1, %13 : vector<1x512xf32>
    %15 = arith.subf %14, %7 : vector<1x512xf32>
    %16 = arith.mulf %4, %12 : vector<1x512xf32>
    %17 = arith.mulf %5, %15 : vector<1x512xf32>
    %18 = arith.addf %16, %17 : vector<1x512xf32>
    %19 = arith.mulf %4, %15 : vector<1x512xf32>
    %20 = arith.mulf %5, %12 : vector<1x512xf32>
    %21 = arith.subf %19, %20 : vector<1x512xf32>
    %22 = arith.mulf %18, %18 : vector<1x512xf32>
    %23 = arith.mulf %21, %21 : vector<1x512xf32>
    %24 = arith.mulf %18, %21 : vector<1x512xf32>
    %25 = tpu.concatenate %18, %21, %9, %22, %23, %24 in 0 : vector<1x512xf32>, vector<1x512xf32>, vector<1x512xf32>, vector<1x512xf32>, vector<1x512xf32>, vector<1x512xf32> -> vector<6x512xf32>
    %c0_10 = arith.constant 0 : index
    %c0_11 = arith.constant 0 : index
    %26 = vector.load %arg1[%c0_10, %c0_11] : memref<56x128xf32, #tpu.memory_space<vmem>>, vector<52x6xf32>
    %cst = arith.constant dense<0.000000e+00> : vector<52x512xf32>
    %27 = tpu.matmul %26, %25, %cst {dimension_numbers = #tpu.dot_dimension_numbers<[1], [0], [0], [1], [0, 0, 1, 1], [], []>} : vector<52x6xf32>, vector<6x512xf32>, vector<52x512xf32> -> vector<52x512xf32>
    %28 = vector.extract_strided_slice %27 {offsets = [0, 0], sizes = [1, 512], strides = [1, 1]} : vector<52x512xf32> to vector<1x512xf32>
    %29 = vector.extract_strided_slice %27 {offsets = [8, 0], sizes = [1, 512], strides = [1, 1]} : vector<52x512xf32> to vector<1x512xf32>
    %30 = vector.extract_strided_slice %27 {offsets = [16, 0], sizes = [32, 512], strides = [1, 1]} : vector<52x512xf32> to vector<32x512xf32>
    %31 = vector.extract_strided_slice %27 {offsets = [48, 0], sizes = [4, 512], strides = [1, 1]} : vector<52x512xf32> to vector<4x512xf32>
    %32 = arith.mulf %28, %28 : vector<1x512xf32>
    %33 = arith.subf %29, %32 : vector<1x512xf32>
    %34 = vector.broadcast %28 : vector<1x512xf32> to vector<32x512xf32>
    %35 = arith.subf %30, %34 : vector<32x512xf32>
    %cst_12 = arith.constant 9.99999974E-6 : f32
    %36 = vector.broadcast %cst_12 : f32 to vector<1x512xf32>
    %37 = arith.addf %33, %36 : vector<1x512xf32>
    %38 = math.rsqrt %37 : vector<1x512xf32>
    %39 = vector.broadcast %38 : vector<1x512xf32> to vector<32x512xf32>
    %40 = arith.mulf %35, %39 : vector<32x512xf32>
    %c0_13 = arith.constant 0 : index
    %c8_14 = arith.constant 8 : index
    %41 = vector.load %arg1[%c0_13, %c8_14] : memref<56x128xf32, #tpu.memory_space<vmem>>, vector<32x1xf32>
    %c0_15 = arith.constant 0 : index
    %c9_16 = arith.constant 9 : index
    %42 = vector.load %arg1[%c0_15, %c9_16] : memref<56x128xf32, #tpu.memory_space<vmem>>, vector<32x1xf32>
    %c0_17 = arith.constant 0 : index
    %c10 = arith.constant 10 : index
    %43 = vector.load %arg1[%c0_17, %c10] : memref<56x128xf32, #tpu.memory_space<vmem>>, vector<32x1xf32>
    %c0_18 = arith.constant 0 : index
    %c11 = arith.constant 11 : index
    %44 = vector.load %arg1[%c0_18, %c11] : memref<56x128xf32, #tpu.memory_space<vmem>>, vector<32x1xf32>
    %c0_19 = arith.constant 0 : index
    %c12 = arith.constant 12 : index
    %45 = vector.load %arg1[%c0_19, %c12] : memref<56x128xf32, #tpu.memory_space<vmem>>, vector<32x1xf32>
    %c0_20 = arith.constant 0 : index
    %c13 = arith.constant 13 : index
    %46 = vector.load %arg1[%c0_20, %c13] : memref<56x128xf32, #tpu.memory_space<vmem>>, vector<4x1xf32>
    %c0_21 = arith.constant 0 : index
    %c0_22 = arith.constant 0 : index
    %47 = vector.load %arg2[%c0_21, %c0_22] : memref<104x128xf32, #tpu.memory_space<vmem>>, vector<32x32xf32>
    %c32 = arith.constant 32 : index
    %c0_23 = arith.constant 0 : index
    %48 = vector.load %arg2[%c32, %c0_23] : memref<104x128xf32, #tpu.memory_space<vmem>>, vector<32x32xf32>
    %c64 = arith.constant 64 : index
    %c0_24 = arith.constant 0 : index
    %49 = vector.load %arg2[%c64, %c0_24] : memref<104x128xf32, #tpu.memory_space<vmem>>, vector<32x32xf32>
    %c96 = arith.constant 96 : index
    %c0_25 = arith.constant 0 : index
    %50 = vector.load %arg2[%c96, %c0_25] : memref<104x128xf32, #tpu.memory_space<vmem>>, vector<4x32xf32>
    %51 = vector.broadcast %41 : vector<32x1xf32> to vector<32x512xf32>
    %52 = arith.mulf %40, %51 : vector<32x512xf32>
    %53 = vector.broadcast %42 : vector<32x1xf32> to vector<32x512xf32>
    %54 = arith.addf %52, %53 : vector<32x512xf32>
    %55 = math.tanh %54 : vector<32x512xf32>
    %cst_26 = arith.constant dense<0.000000e+00> : vector<32x512xf32>
    %56 = tpu.matmul %47, %55, %cst_26 {dimension_numbers = #tpu.dot_dimension_numbers<[1], [0], [0], [1], [0, 0, 1, 1], [], []>} : vector<32x32xf32>, vector<32x512xf32>, vector<32x512xf32> -> vector<32x512xf32>
    %57 = vector.broadcast %43 : vector<32x1xf32> to vector<32x512xf32>
    %58 = arith.addf %56, %57 : vector<32x512xf32>
    %59 = math.tanh %58 : vector<32x512xf32>
    %cst_27 = arith.constant dense<0.000000e+00> : vector<32x512xf32>
    %60 = tpu.matmul %48, %59, %cst_27 {dimension_numbers = #tpu.dot_dimension_numbers<[1], [0], [0], [1], [0, 0, 1, 1], [], []>} : vector<32x32xf32>, vector<32x512xf32>, vector<32x512xf32> -> vector<32x512xf32>
    %61 = vector.broadcast %44 : vector<32x1xf32> to vector<32x512xf32>
    %62 = arith.addf %60, %61 : vector<32x512xf32>
    %63 = math.tanh %62 : vector<32x512xf32>
    %cst_28 = arith.constant dense<0.000000e+00> : vector<32x512xf32>
    %64 = tpu.matmul %49, %63, %cst_28 {dimension_numbers = #tpu.dot_dimension_numbers<[1], [0], [0], [1], [0, 0, 1, 1], [], []>} : vector<32x32xf32>, vector<32x512xf32>, vector<32x512xf32> -> vector<32x512xf32>
    %65 = vector.broadcast %45 : vector<32x1xf32> to vector<32x512xf32>
    %66 = arith.addf %64, %65 : vector<32x512xf32>
    %cst_29 = arith.constant 0.000000e+00 : f32
    %67 = vector.broadcast %cst_29 : f32 to vector<32x512xf32>
    %68 = arith.maximumf %66, %67 : vector<32x512xf32>
    %cst_30 = arith.constant dense<0.000000e+00> : vector<4x512xf32>
    %69 = tpu.matmul %50, %68, %cst_30 {dimension_numbers = #tpu.dot_dimension_numbers<[1], [0], [0], [1], [0, 0, 1, 1], [], []>} : vector<4x32xf32>, vector<32x512xf32>, vector<4x512xf32> -> vector<4x512xf32>
    %70 = vector.broadcast %46 : vector<4x1xf32> to vector<4x512xf32>
    %71 = arith.addf %69, %70 : vector<4x512xf32>
    %cst_31 = arith.constant 0.000000e+00 : f32
    %72 = vector.broadcast %cst_31 : f32 to vector<4x512xf32>
    %73 = arith.maximumf %71, %72 : vector<4x512xf32>
    %74 = arith.mulf %73, %31 : vector<4x512xf32>
    %cst_32 = arith.constant dense<0.000000e+00> : vector<512xf32>
    %75 = vector.multi_reduction <add>, %74, %cst_32 [0] : vector<4x512xf32> to vector<512xf32>
    %76 = vector.shape_cast %75 : vector<512xf32> to vector<1x512xf32>
    %c0_33 = arith.constant 0 : index
    %c0_34 = arith.constant 0 : index
    %77 = vector.load %arg3[%c0_33, %c0_34] : memref<1x512xf32, #tpu.memory_space<vmem>>, vector<1x512xf32>
    tpu.vector_store %arg3[%c0_33, %c0_34], %76 {strides = array<i32>} : memref<1x512xf32, #tpu.memory_space<vmem>>, vector<1x512xf32>,
    return
  }
}

</mosaic_0001>

<llo_original>
// kernel: tpu_custom_call.1
$region0: #{tpu_custom_call.1}
  #allocation0 [shape = 'u32[]', space=smem, size = 0x4, offset = 0x4, fixed_abs, tag = 'smem constant byte address 0x4 - core index']
  #allocation1 [shape = 'u32[144,128]{1,0:T(1,128)}', space=vmem, size = 0x12000, scoped, tag = 'internal scratch']
  %s0 = inlined_call_operand.hbm [shape: f32[16,512], index: 0, kind: input, shape index: {}]
  %s1 = inlined_call_operand.hbm [shape: f32[56,128], index: 1, kind: input, shape index: {}]
  %s2 = inlined_call_operand.hbm [shape: f32[104,128], index: 2, kind: input, shape index: {}]
  %s3 = inlined_call_operand.hbm [shape: f32[1,512], index: 3, kind: output, shape index: {}]
  %s4 = sld [smem:[#allocation0]]
  $region34: #{tpu_custom_call.1} parent=0
    _
  %s6 = ssub.s32 1, %s4
  %s7 = scalar_select 0, %s6, %s4
  $region1: #{tpu_custom_call.1} parent=0
    #allocation2 [shape = 'u8[32768]{0}', space=vmem, size = 0x8000, scoped, tag = 'input window, operand 0, single buffered']
    #allocation3 [shape = 's32[1]{0}', space=sflag, size = 0x4, scoped, tag = 'scoped memory for tpu_custom_call.1']
    #allocation4 [shape = 's32[1]{0}', space=sflag, size = 0x4, scoped, tag = 'scoped memory for tpu_custom_call.1']
    #allocation5 [shape = 'u8[28672]{0}', space=vmem, size = 0x7000, scoped, tag = 'input window, operand 1, single buffered']
    #allocation6 [shape = 's32[1]{0}', space=sflag, size = 0x4, scoped, tag = 'scoped memory for tpu_custom_call.1']
    #allocation7 [shape = 'u8[53248]{0}', space=vmem, size = 0xd000, scoped, tag = 'input window, operand 2, single buffered']
    #allocation8 [shape = 'u8[2048]{0}', space=vmem, size = 0x800, scoped, tag = 'output window, operand 0, single buffered']
    %8 = vsyncpa [#allocation3], 0
    %9 = vsyncpa [#allocation6], 0
    %10 = vsyncpa [#allocation4], 0
    // Predicated region
    $region2: #{tpu_custom_call.1} parent=1 // pred_check
      _
    $region3: #{tpu_custom_call.1} parent=1 // pred_check_branch
      %12 = sbr.rel (0) target = $region5
    $region4: #{tpu_custom_call.1} parent=1 // pred_region
      %s14 = ssub.s32 1024, 1024
      %15 = vsyncadd [#allocation3], %s14
      %s16 = sshll.u32 [#allocation2], 4
      %s17 = int_to_ptr.vmem [resolvable:$true] %s16
      %22 = dma.hbm_to_vmem [thread:$0]  %s0, 1024, %s17, [#allocation3], 512, 512, 32
    $region5: #{tpu_custom_call.1} parent=1 // pred_fallthru
      _
    // Predicated region
    $region6: #{tpu_custom_call.1} parent=1 // pred_check
      _
    $region7: #{tpu_custom_call.1} parent=1 // pred_check_branch
      %24 = sbr.rel (0) target = $region9
    $region8: #{tpu_custom_call.1} parent=1 // pred_region
      %s26 = ssub.s32 896, 896
      %27 = vsyncadd [#allocation6], %s26
      %s28 = sshll.u32 [#allocation5], 4
      %s29 = int_to_ptr.vmem [resolvable:$true] %s28
      %34 = dma.hbm_to_vmem [thread:$0]  %s1, 896, %s29, [#allocation6], 128, 128, 8
    $region9: #{tpu_custom_call.1} parent=1 // pred_fallthru
      _
    // Predicated region
    $region10: #{tpu_custom_call.1} parent=1 // pred_check
      _
    $region11: #{tpu_custom_call.1} parent=1 // pred_check_branch
      %36 = sbr.rel (0) target = $region13
    $region12: #{tpu_custom_call.1} parent=1 // pred_region
      %s38 = ssub.s32 1664, 1664
      %39 = vsyncadd [#allocation6], %s38
      %s40 = sshll.u32 [#allocation7], 4
      %s41 = int_to_ptr.vmem [resolvable:$true] %s40
      %46 = dma.hbm_to_vmem [thread:$0]  %s2, 1664, %s41, [#allocation6], 128, 128, 8
    $region13: #{tpu_custom_call.1} parent=1 // pred_fallthru
      _
    // Predicated region
    $region14: #{tpu_custom_call.1} parent=1 // pred_check
      _
    $region15: #{tpu_custom_call.1} parent=1 // pred_check_branch
      %48 = sbr.rel (0) target = $region17
    $region16: #{tpu_custom_call.1} parent=1 // pred_region
      %49 = dma.done [#allocation3], 1024
    $region17: #{tpu_custom_call.1} parent=1 // pred_fallthru
      _
    // Predicated region
    $region18: #{tpu_custom_call.1} parent=1 // pred_check
      _
    $region19: #{tpu_custom_call.1} parent=1 // pred_check_branch
      %51 = sbr.rel (0) target = $region21
    $region20: #{tpu_custom_call.1} parent=1 // pred_region
      %52 = dma.done [#allocation6], 896
    $region21: #{tpu_custom_call.1} parent=1 // pred_fallthru
      _
    // Predicated region
    $region22: #{tpu_custom_call.1} parent=1 // pred_check
      _
    $region23: #{tpu_custom_call.1} parent=1 // pred_check_branch
      %54 = sbr.rel (0) target = $region25
    $region24: #{tpu_custom_call.1} parent=1 // pred_region
      %55 = dma.done [#allocation6], 1664
    $region25: #{tpu_custom_call.1} parent=1 // pred_fallthru
      _
    %v56 = vld [vmem:[#allocation2] ss:$8 sm:$0xf]
    %s57 = scalar_lea.vmem [#allocation2], 1
    %v58 = vld [vmem:[%s57] ss:$8 sm:$0xf]
    %s59 = scalar_lea.vmem [#allocation2], 2
    %v60 = vld [vmem:[%s59] ss:$8 sm:$0xf]
    %s61 = scalar_lea.vmem [#allocation2], 3
    %v62 = vld [vmem:[%s61] ss:$8 sm:$0xf]
    %s63 = scalar_lea.vmem [#allocation2], 4
    %v64 = vld [vmem:[%s63] ss:$8 sm:$0xf]
    %s65 = scalar_lea.vmem [#allocation2], 5
    %v66 = vld [vmem:[%s65] ss:$8 sm:$0xf]
    %s67 = scalar_lea.vmem [#allocation2], 6
    %v68 = vld [vmem:[%s67] ss:$8 sm:$0xf]
    %s69 = scalar_lea.vmem [#allocation2], 7
    %v70 = vld [vmem:[%s69] ss:$8 sm:$0xf]
    %s71 = scalar_lea.vmem [#allocation2], 32
    %v72 = vld [vmem:[%s71] ss:$8 sm:$0xf]
    %s73 = scalar_lea.vmem [#allocation2], 33
    %v74 = vld [vmem:[%s73] ss:$8 sm:$0xf]
    %v75 = vmul.f32 %v60, %v72
    %v76 = vadd.f32 %v56, %v75
    %v77 = vsub.f32 %v76, %v68
    %v78 = vmul.f32 %v62, %v72
    %v79 = vadd.f32 %v58, %v78
    %v80 = vsub.f32 %v79, %v70
    %v81 = vmul.f32 %v64, %v77
    %v82 = vmul.f32 %v66, %v80
    %v83 = vadd.f32 %v81, %v82
    %v84 = vmul.f32 %v64, %v80
    %v85 = vmul.f32 %v66, %v77
    %v86 = vsub.f32 %v84, %v85
    %v87 = vmul.f32 %v83, %v83
    %v88 = vmul.f32 %v86, %v86
    %v89 = vmul.f32 %v83, %v86
    %v91 = vlaneseq
    %v92 = vshrl.u32 %v91, 7
    %v93 = vsub.s32 0, %v92
    %v94 = vrot.slane %v83, %v93
    %v95 = vlaneseq
    %v96 = vshrl.u32 %v95, 7
    %v97 = vsub.s32 1, %v96
    %v98 = vrot.slane %v83, %v97
    %v99 = vlaneseq
    %v100 = vshrl.u32 %v99, 7
    %v101 = vsub.s32 2, %v100
    %v102 = vrot.slane %v83, %v101
    %v103 = vlaneseq
    %v104 = vshrl.u32 %v103, 7
    %v105 = vsub.s32 3, %v104
    %v106 = vrot.slane %v83, %v105
    %v112 = vlaneseq
    %v113 = vshrl.u32 %v112, 7
    %v114 = vsub.s32 0, %v113
    %v115 = vrot.slane %v86, %v114
    %v116 = vlaneseq
    %v117 = vshrl.u32 %v116, 7
    %v118 = vsub.s32 1, %v117
    %v119 = vrot.slane %v86, %v118
    %v120 = vlaneseq
    %v121 = vshrl.u32 %v120, 7
    %v122 = vsub.s32 2, %v121
    %v123 = vrot.slane %v86, %v122
    %v124 = vlaneseq
    %v125 = vshrl.u32 %v124, 7
    %v126 = vsub.s32 3, %v125
    %v127 = vrot.slane %v86, %v126
    %v133 = vlaneseq
    %v134 = vshrl.u32 %v133, 7
    %v135 = vsub.s32 0, %v134
    %v136 = vrot.slane %v74, %v135
    %v137 = vlaneseq
    %v138 = vshrl.u32 %v137, 7
    %v139 = vsub.s32 1, %v138
    %v140 = vrot.slane %v74, %v139
    %v141 = vlaneseq
    %v142 = vshrl.u32 %v141, 7
    %v143 = vsub.s32 2, %v142
    %v144 = vrot.slane %v74, %v143
    %v145 = vlaneseq
    %v146 = vshrl.u32 %v145, 7
    %v147 = vsub.s32 3, %v146
    %v148 = vrot.slane %v74, %v147
    %v154 = vlaneseq
    %v155 = vshrl.u32 %v154, 7
    %v156 = vsub.s32 0, %v155
    %v157 = vrot.slane %v87, %v156
    %v158 = vlaneseq
    %v159 = vshrl.u32 %v158, 7
    %v160 = vsub.s32 1, %v159
    %v161 = vrot.slane %v87, %v160
    %v162 = vlaneseq
    %v163 = vshrl.u32 %v162, 7
    %v164 = vsub.s32 2, %v163
    %v165 = vrot.slane %v87, %v164
    %v166 = vlaneseq
    %v167 = vshrl.u32 %v166, 7
    %v168 = vsub.s32 3, %v167
    %v169 = vrot.slane %v87, %v168
    %v175 = vlaneseq
    %v176 = vshrl.u32 %v175, 7
    %v177 = vsub.s32 0, %v176
    %v178 = vrot.slane %v88, %v177
    %v179 = vlaneseq
    %v180 = vshrl.u32 %v179, 7
    %v181 = vsub.s32 1, %v180
    %v182 = vrot.slane %v88, %v181
    %v183 = vlaneseq
    %v184 = vshrl.u32 %v183, 7
    %v185 = vsub.s32 2, %v184
    %v186 = vrot.slane %v88, %v185
    %v187 = vlaneseq
    %v188 = vshrl.u32 %v187, 7
    %v189 = vsub.s32 3, %v188
    %v190 = vrot.slane %v88, %v189
    %v196 = vlaneseq
    %v197 = vshrl.u32 %v196, 7
    %v198 = vsub.s32 0, %v197
    %v199 = vrot.slane %v89, %v198
    %v200 = vlaneseq
    %v201 = vshrl.u32 %v200, 7
    %v202 = vsub.s32 1, %v201
    %v203 = vrot.slane %v89, %v202
    %v204 = vlaneseq
    %v205 = vshrl.u32 %v204, 7
    %v206 = vsub.s32 2, %v205
    %v207 = vrot.slane %v89, %v206
    %v208 = vlaneseq
    %v209 = vshrl.u32 %v208, 7
    %v210 = vsub.s32 3, %v209
    %v211 = vrot.slane %v89, %v210
    %vm216 = vcmask 1040384
    %v217 = vsel %vm216, %v94, %v115
    %v218 = vsel %vm216, %v98, %v119
    %v219 = vsel %vm216, %v102, %v123
    %v220 = vsel %vm216, %v106, %v127
    %vm221 = vcmask 1041408
    %v222 = vsel %vm221, %v217, %v136
    %v223 = vsel %vm221, %v218, %v140
    %v224 = vsel %vm221, %v219, %v144
    %v225 = vsel %vm221, %v220, %v148
    %vm226 = vcmask 1042432
    %v227 = vsel %vm226, %v222, %v157
    %v228 = vsel %vm226, %v223, %v161
    %v229 = vsel %vm226, %v224, %v165
    %v230 = vsel %vm226, %v225, %v169
    %vm231 = vcmask 1043456
    %v232 = vsel %vm231, %v227, %v178
    %v233 = vsel %vm231, %v228, %v182
    %v234 = vsel %vm231, %v229, %v186
    %v235 = vsel %vm231, %v230, %v190
    %vm236 = vcmask 1044480
    %v237 = vsel %vm236, %v232, %v199
    %v238 = vsel %vm236, %v233, %v203
    %v239 = vsel %vm236, %v234, %v207
    %v240 = vsel %vm236, %v235, %v211
    %v241 = vld [vmem:[#allocation5] sm:$0xff]
    %v242 = vld [vmem:[#allocation5 + $0x8] sm:$0xff]
    %v243 = vld [vmem:[#allocation5 + $0x10] sm:$0xff]
    %v244 = vld [vmem:[#allocation5 + $0x18] sm:$0xff]
    %v245 = vld [vmem:[#allocation5 + $0x20] sm:$0xff]
    %v246 = vld [vmem:[#allocation5 + $0x28] sm:$0xff]
    %v247 = vld [vmem:[#allocation5 + $0x30] sm:$0xf]
    %vm248 = vcmask 48128
    %v250 = vsel %vm248, %v241, 0
    %v253 = vsel %vm248, %v242, 0
    %v256 = vsel %vm248, %v243, 0
    %v259 = vsel %vm248, %v244, 0
    %v262 = vsel %vm248, %v245, 0
    %v265 = vsel %vm248, %v246, 0
    %v268 = vsel %vm248, %v247, 0
    %vm270 = vcmask 1045504
    %v272 = vsel %vm270, %v237, 0
    %v275 = vsel %vm270, %v238, 0
    %v278 = vsel %vm270, %v239, 0
    %v281 = vsel %vm270, %v240, 0
    %283 = vmatprep.subr.mxu0 %v275
    %284 = vmatpush1.msra.mxu0 %v272
    %285 = vmatprep.subr.mxu0 0.0
    %286 = vmatpush1.msra.mxu0 0.0
    %287 = vmatprep.subr.mxu0 0.0
    %288 = vmatpush1.msra.mxu0 0.0
    %289 = vmatprep.subr.mxu0 0.0
    %290 = vmatpush1.msra.mxu0 0.0
    %291 = vmatprep.subr.mxu0 0.0
    %292 = vmatpush1.msra.mxu0 0.0
    %293 = vmatprep.subr.mxu0 0.0
    %294 = vmatpush1.msra.mxu0 0.0
    %295 = vmatprep.subr.mxu0 0.0
    %296 = vmatpush1.msra.mxu0 0.0
    %297 = vmatprep.subr.mxu0 0.0
    %298 = vmatpush1.msra.mxu0 0.0
    %299 = vmatprep.subr.mxu0 0.0
    %300 = vmatpush1.msra.mxu0 0.0
    %301 = vmatprep.subr.mxu0 0.0
    %302 = vmatpush1.msra.mxu0 0.0
    %303 = vmatprep.subr.mxu0 0.0
    %304 = vmatpush1.msra.mxu0 0.0
    %305 = vmatprep.subr.mxu0 0.0
    %306 = vmatpush1.msra.mxu0 0.0
    %307 = vmatprep.subr.mxu0 0.0
    %308 = vmatpush1.msra.mxu0 0.0
    %309 = vmatprep.subr.mxu0 0.0
    %310 = vmatpush1.msra.mxu0 0.0
    %311 = vmatprep.subr.mxu0 0.0
    %312 = vmatpush1.msra.mxu0 0.0
    %313 = vmatprep.subr.mxu0 0.0
    %314 = vmatpush1.msra.mxu0 0.0
    %315 = vmatprep.subr.mxu0 0.0
    %316 = vmatpush1.msra.mxu0 0.0
    %317 = vmatprep.subr.mxu0 0.0
    %318 = vmatpush1.msra.mxu0 0.0
    %319 = vmatprep.subr.mxu0 0.0
    %320 = vmatpush1.msra.mxu0 0.0
    %321 = vmatprep.subr.mxu0 0.0
    %322 = vmatpush1.msra.mxu0 0.0
    %323 = vmatprep.subr.mxu0 0.0
    %324 = vmatpush1.msra.mxu0 0.0
    %325 = vmatprep.subr.mxu0 0.0
    %326 = vmatpush1.msra.mxu0 0.0
    %327 = vmatprep.subr.mxu0 0.0
    %328 = vmatpush1.msra.mxu0 0.0
    %329 = vmatprep.subr.mxu0 0.0
    %330 = vmatpush1.msra.mxu0 0.0
    %331 = vmatprep.subr.mxu0 0.0
    %332 = vmatpush1.msra.mxu0 0.0
    %333 = vmatprep.subr.mxu0 0.0
    %334 = vmatpush1.msra.mxu0 0.0
    %335 = vmatprep.subr.mxu0 0.0
    %336 = vmatpush1.msra.mxu0 0.0
    %337 = vmatprep.subr.mxu0 0.0
    %338 = vmatpush1.msra.mxu0 0.0
    %339 = vmatprep.subr.mxu0 0.0
    %340 = vmatpush1.msra.mxu0 0.0
    %341 = vmatprep.subr.mxu0 0.0
    %342 = vmatpush1.msra.mxu0 0.0
    %343 = vmatprep.subr.mxu0 0.0
    %344 = vmatpush1.msra.mxu0 0.0
    %345 = vmatprep.subr.mxu0 0.0
    %346 = vmatpush1.msra.mxu0 0.0
    %347 = vmatprep.mubr.f32.mxu0 0.0
    %348 = vmatmul.mubr.f32.gmra.mrb[0].mxu0 %v250
    %v349 = vpop.f32.mrb[0].mxu0
    %v350 = vadd.f32 0.0, %v349
    %v351 = vpop.f32.mrb[0].mxu0
    %v352 = vadd.f32 0.0, %v351
    %353 = vmatprep.mubr.f32.mxu0 0.0
    %354 = vmatmul.mubr.f32.gmra.mrb[0].mxu0 %v253
    %v355 = vpop.f32.mrb[0].mxu0
    %v356 = vadd.f32 0.0, %v355
    %v357 = vpop.f32.mrb[0].mxu0
    %v358 = vadd.f32 0.0, %v357
    %359 = vmatprep.mubr.f32.mxu0 0.0
    %360 = vmatmul.mubr.f32.gmra.mrb[0].mxu0 %v256
    %v361 = vpop.f32.mrb[0].mxu0
    %v362 = vadd.f32 0.0, %v361
    %v363 = vpop.f32.mrb[0].mxu0
    %v364 = vadd.f32 0.0, %v363
    %365 = vmatprep.mubr.f32.mxu0 0.0
    %366 = vmatmul.mubr.f32.gmra.mrb[0].mxu0 %v259
    %v367 = vpop.f32.mrb[0].mxu0
    %v368 = vadd.f32 0.0, %v367
    %v369 = vpop.f32.mrb[0].mxu0
    %v370 = vadd.f32 0.0, %v369
    %371 = vmatprep.mubr.f32.mxu0 0.0
    %372 = vmatmul.mubr.f32.gmra.mrb[0].mxu0 %v262
    %v373 = vpop.f32.mrb[0].mxu0
    %v374 = vadd.f32 0.0, %v373
    %v375 = vpop.f32.mrb[0].mxu0
    %v376 = vadd.f32 0.0, %v375
    %377 = vmatprep.mubr.f32.mxu0 0.0
    %378 = vmatmul.mubr.f32.gmra.mrb[0].mxu0 %v265
    %v379 = vpop.f32.mrb[0].mxu0
    %v380 = vadd.f32 0.0, %v379
    %v381 = vpop.f32.mrb[0].mxu0
    %v382 = vadd.f32 0.0, %v381
    %383 = vmatprep.mubr.f32.mxu0 0.0
    %384 = vmatmul.mubr.f32.gmra.mrb[0].mxu0 %v268
    %v385 = vpop.f32.mrb[0].mxu0
    %v386 = vadd.f32 0.0, %v385
    %v387 = vpop.f32.mrb[0].mxu0
    %v388 = vadd.f32 0.0, %v387
    %389 = vdwg.mxu0
    %390 = vmatprep.subr.mxu0 %v281
    %391 = vmatpush1.msra.mxu0 %v278
    %392 = vmatprep.subr.mxu0 0.0
    %393 = vmatpush1.msra.mxu0 0.0
    %394 = vmatprep.subr.mxu0 0.0
    %395 = vmatpush1.msra.mxu0 0.0
    %396 = vmatprep.subr.mxu0 0.0
    %397 = vmatpush1.msra.mxu0 0.0
    %398 = vmatprep.subr.mxu0 0.0
    %399 = vmatpush1.msra.mxu0 0.0
    %400 = vmatprep.subr.mxu0 0.0
    %401 = vmatpush1.msra.mxu0 0.0
    %402 = vmatprep.subr.mxu0 0.0
    %403 = vmatpush1.msra.mxu0 0.0
    %404 = vmatprep.subr.mxu0 0.0
    %405 = vmatpush1.msra.mxu0 0.0
    %406 = vmatprep.subr.mxu0 0.0
    %407 = vmatpush1.msra.mxu0 0.0
    %408 = vmatprep.subr.mxu0 0.0
    %409 = vmatpush1.msra.mxu0 0.0
    %410 = vmatprep.subr.mxu0 0.0
    %411 = vmatpush1.msra.mxu0 0.0
    %412 = vmatprep.subr.mxu0 0.0
    %413 = vmatpush1.msra.mxu0 0.0
    %414 = vmatprep.subr.mxu0 0.0
    %415 = vmatpush1.msra.mxu0 0.0
    %416 = vmatprep.subr.mxu0 0.0
    %417 = vmatpush1.msra.mxu0 0.0
    %418 = vmatprep.subr.mxu0 0.0
    %419 = vmatpush1.msra.mxu0 0.0
    %420 = vmatprep.subr.mxu0 0.0
    %421 = vmatpush1.msra.mxu0 0.0
    %422 = vmatprep.subr.mxu0 0.0
    %423 = vmatpush1.msra.mxu0 0.0
    %424 = vmatprep.subr.mxu0 0.0
    %425 = vmatpush1.msra.mxu0 0.0
    %426 = vmatprep.subr.mxu0 0.0
    %427 = vmatpush1.msra.mxu0 0.0
    %428 = vmatprep.subr.mxu0 0.0
    %429 = vmatpush1.msra.mxu0 0.0
    %430 = vmatprep.subr.mxu0 0.0
    %431 = vmatpush1.msra.mxu0 0.0
    %432 = vmatprep.subr.mxu0 0.0
    %433 = vmatpush1.msra.mxu0 0.0
    %434 = vmatprep.subr.mxu0 0.0
    %435 = vmatpush1.msra.mxu0 0.0
    %436 = vmatprep.subr.mxu0 0.0
    %437 = vmatpush1.msra.mxu0 0.0
    %438 = vmatprep.subr.mxu0 0.0
    %439 = vmatpush1.msra.mxu0 0.0
    %440 = vmatprep.subr.mxu0 0.0
    %441 = vmatpush1.msra.mxu0 0.0
    %442 = vmatprep.subr.mxu0 0.0
    %443 = vmatpush1.msra.mxu0 0.0
    %444 = vmatprep.subr.mxu0 0.0
    %445 = vmatpush1.msra.mxu0 0.0
    %446 = vmatprep.subr.mxu0 0.0
    %447 = vmatpush1.msra.mxu0 0.0
    %448 = vmatprep.subr.mxu0 0.0
    %449 = vmatpush1.msra.mxu0 0.0
    %450 = vmatprep.subr.mxu0 0.0
    %451 = vmatpush1.msra.mxu0 0.0
    %452 = vmatprep.subr.mxu0 0.0
    %453 = vmatpush1.msra.mxu0 0.0
    %454 = vmatprep.mubr.f32.mxu0 0.0
    %455 = vmatmul.mubr.f32.gmra.mrb[0].mxu0 %v250
    %v456 = vpop.f32.mrb[0].mxu0
    %v457 = vadd.f32 0.0, %v456
    %v458 = vpop.f32.mrb[0].mxu0
    %v459 = vadd.f32 0.0, %v458
    %460 = vmatprep.mubr.f32.mxu0 0.0
    %461 = vmatmul.mubr.f32.gmra.mrb[0].mxu0 %v253
    %v462 = vpop.f32.mrb[0].mxu0
    %v463 = vadd.f32 0.0, %v462
    %v464 = vpop.f32.mrb[0].mxu0
    %v465 = vadd.f32 0.0, %v464
    %466 = vmatprep.mubr.f32.mxu0 0.0
    %467 = vmatmul.mubr.f32.gmra.mrb[0].mxu0 %v256
    %v468 = vpop.f32.mrb[0].mxu0
    %v469 = vadd.f32 0.0, %v468
    %v470 = vpop.f32.mrb[0].mxu0
    %v471 = vadd.f32 0.0, %v470
    %472 = vmatprep.mubr.f32.mxu0 0.0
    %473 = vmatmul.mubr.f32.gmra.mrb[0].mxu0 %v259
    %v474 = vpop.f32.mrb[0].mxu0
    %v475 = vadd.f32 0.0, %v474
    %v476 = vpop.f32.mrb[0].mxu0
    %v477 = vadd.f32 0.0, %v476
    %478 = vmatprep.mubr.f32.mxu0 0.0
    %479 = vmatmul.mubr.f32.gmra.mrb[0].mxu0 %v262
    %v480 = vpop.f32.mrb[0].mxu0
    %v481 = vadd.f32 0.0, %v480
    %v482 = vpop.f32.mrb[0].mxu0
    %v483 = vadd.f32 0.0, %v482
    %484 = vmatprep.mubr.f32.mxu0 0.0
    %485 = vmatmul.mubr.f32.gmra.mrb[0].mxu0 %v265
    %v486 = vpop.f32.mrb[0].mxu0
    %v487 = vadd.f32 0.0, %v486
    %v488 = vpop.f32.mrb[0].mxu0
    %v489 = vadd.f32 0.0, %v488
    %490 = vmatprep.mubr.f32.mxu0 0.0
    %491 = vmatmul.mubr.f32.gmra.mrb[0].mxu0 %v268
    %v492 = vpop.f32.mrb[0].mxu0
    %v493 = vadd.f32 0.0, %v492
    %v494 = vpop.f32.mrb[0].mxu0
    %v495 = vadd.f32 0.0, %v494
    %496 = vdwg.mxu0
    %v497 = vmul.f32 %v350, %v350
    %v498 = vmul.f32 %v352, %v352
    %v499 = vmul.f32 %v457, %v457
    %v500 = vmul.f32 %v459, %v459
    %v501 = vsub.f32 %v356, %v497
    %v502 = vsub.f32 %v358, %v498
    %v503 = vsub.f32 %v463, %v499
    %v504 = vsub.f32 %v465, %v500
    %v505 = vlaneseq
    %v506 = vshrl.u32 %v505, 7
    %v507 = vsub.s32 0, %v506
    %v508 = vrot.slane %v350, %v507
    %v509 = vlaneseq
    %v510 = vshrl.u32 %v509, 7
    %v511 = vsub.s32 0, %v510
    %v512 = vrot.slane %v352, %v511
    %v513 = vlaneseq
    %v514 = vshrl.u32 %v513, 7
    %v515 = vsub.s32 0, %v514
    %v516 = vrot.slane %v457, %v515
    %v517 = vlaneseq
    %v518 = vshrl.u32 %v517, 7
    %v519 = vsub.s32 0, %v518
    %v520 = vrot.slane %v459, %v519
    %v521 = vsub.f32 %v362, %v508
    %v522 = vsub.f32 %v364, %v512
    %v523 = vsub.f32 %v469, %v516
    %v524 = vsub.f32 %v471, %v520
    %v525 = vsub.f32 %v368, %v508
    %v526 = vsub.f32 %v370, %v512
    %v527 = vsub.f32 %v475, %v516
    %v528 = vsub.f32 %v477, %v520
    %v529 = vsub.f32 %v374, %v508
    %v530 = vsub.f32 %v376, %v512
    %v531 = vsub.f32 %v481, %v516
    %v532 = vsub.f32 %v483, %v520
    %v533 = vsub.f32 %v380, %v508
    %v534 = vsub.f32 %v382, %v512
    %v535 = vsub.f32 %v487, %v516
    %v536 = vsub.f32 %v489, %v520
    %v537 = vadd.f32 %v501, 1e-05
    %v538 = vadd.f32 %v502, 1e-05
    %v539 = vadd.f32 %v503, 1e-05
    %v540 = vadd.f32 %v504, 1e-05
    %v541 = vrsqrt.pop %v537
    %v542 = vrsqrt.pop %v538
    %v543 = vrsqrt.pop %v539
    %v544 = vrsqrt.pop %v540
    %v545 = vlaneseq
    %v546 = vshrl.u32 %v545, 7
    %v547 = vsub.s32 0, %v546
    %v548 = vrot.slane %v541, %v547
    %v549 = vlaneseq
    %v550 = vshrl.u32 %v549, 7
    %v551 = vsub.s32 0, %v550
    %v552 = vrot.slane %v542, %v551
    %v553 = vlaneseq
    %v554 = vshrl.u32 %v553, 7
    %v555 = vsub.s32 0, %v554
    %v556 = vrot.slane %v543, %v555
    %v557 = vlaneseq
    %v558 = vshrl.u32 %v557, 7
    %v559 = vsub.s32 0, %v558
    %v560 = vrot.slane %v544, %v559
    %v561 = vmul.f32 %v521, %v548
    %v562 = vmul.f32 %v522, %v552
    %v563 = vmul.f32 %v523, %v556
    %v564 = vmul.f32 %v524, %v560
    %v565 = vmul.f32 %v525, %v548
    %v566 = vmul.f32 %v526, %v552
    %v567 = vmul.f32 %v527, %v556
    %v568 = vmul.f32 %v528, %v560
    %v569 = vmul.f32 %v529, %v548
    %v570 = vmul.f32 %v530, %v552
    %v571 = vmul.f32 %v531, %v556
    %v572 = vmul.f32 %v532, %v560
    %v573 = vmul.f32 %v533, %v548
    %v574 = vmul.f32 %v534, %v552
    %v575 = vmul.f32 %v535, %v556
    %v576 = vmul.f32 %v536, %v560
    %v577 = vld [vmem:[#allocation5] sm:$0xff]
    %v578 = vld [vmem:[#allocation5 + $0x8] sm:$0xff]
    %v579 = vld [vmem:[#allocation5 + $0x10] sm:$0xff]
    %v580 = vld [vmem:[#allocation5 + $0x18] sm:$0xff]
    %v581 = vld [vmem:[#allocation5] sm:$0xf]
    %v582 = vld [vmem:[#allocation7] sm:$0xff]
    %v583 = vld [vmem:[#allocation7 + $0x8] sm:$0xff]
    %v584 = vld [vmem:[#allocation7 + $0x10] sm:$0xff]
    %v585 = vld [vmem:[#allocation7 + $0x18] sm:$0xff]
    %v586 = vld [vmem:[#allocation7 + $0x20] sm:$0xff]
    %v587 = vld [vmem:[#allocation7 + $0x28] sm:$0xff]
    %v588 = vld [vmem:[#allocation7 + $0x30] sm:$0xff]
    %v589 = vld [vmem:[#allocation7 + $0x38] sm:$0xff]
    %v590 = vld [vmem:[#allocation7 + $0x40] sm:$0xff]
    %v591 = vld [vmem:[#allocation7 + $0x48] sm:$0xff]
    %v592 = vld [vmem:[#allocation7 + $0x50] sm:$0xff]
    %v593 = vld [vmem:[#allocation7 + $0x58] sm:$0xff]
    %v594 = vld [vmem:[#allocation7 + $0x60] sm:$0xf]
    %596 = vset.pattern.permute.xlu0 8
    %597 = vperm.xlu0 %596, %v577
    %v598 = vpop.permute.xlu0 %597
    %601 = vset.pattern.permute.xlu0 8
    %602 = vperm.xlu0 %601, %v578
    %v603 = vpop.permute.xlu0 %602
    %606 = vset.pattern.permute.xlu0 8
    %607 = vperm.xlu0 %606, %v579
    %v608 = vpop.permute.xlu0 %607
    %611 = vset.pattern.permute.xlu0 8
    %612 = vperm.xlu0 %611, %v580
    %v613 = vpop.permute.xlu0 %612
    %v615 = vmul.f32 %v561, %v598
    %v616 = vmul.f32 %v562, %v598
    %v617 = vmul.f32 %v563, %v598
    %v618 = vmul.f32 %v564, %v598
    %v619 = vmul.f32 %v565, %v603
    %v620 = vmul.f32 %v566, %v603
    %v621 = vmul.f32 %v567, %v603
    %v622 = vmul.f32 %v568, %v603
    %v623 = vmul.f32 %v569, %v608
    %v624 = vmul.f32 %v570, %v608
    %v625 = vmul.f32 %v571, %v608
    %v626 = vmul.f32 %v572, %v608
    %v627 = vmul.f32 %v573, %v613
    %v628 = vmul.f32 %v574, %v613
    %v629 = vmul.f32 %v575, %v613
    %v630 = vmul.f32 %v576, %v613
    %631 = vset.pattern.permute.xlu0 9
    %632 = vperm.xlu0 %631, %v577
    %v633 = vpop.permute.xlu0 %632
    %635 = vset.pattern.permute.xlu0 9
    %636 = vperm.xlu0 %635, %v578
    %v637 = vpop.permute.xlu0 %636
    %639 = vset.pattern.permute.xlu0 9
    %640 = vperm.xlu0 %639, %v579
    %v641 = vpop.permute.xlu0 %640
    %643 = vset.pattern.permute.xlu0 9
    %644 = vperm.xlu0 %643, %v580
    %v645 = vpop.permute.xlu0 %644
    %v647 = vadd.f32 %v615, %v633
    %v648 = vadd.f32 %v616, %v633
    %v649 = vadd.f32 %v617, %v633
    %v650 = vadd.f32 %v618, %v633
    %v651 = vadd.f32 %v619, %v637
    %v652 = vadd.f32 %v620, %v637
    %v653 = vadd.f32 %v621, %v637
    %v654 = vadd.f32 %v622, %v637
    %v655 = vadd.f32 %v623, %v641
    %v656 = vadd.f32 %v624, %v641
    %v657 = vadd.f32 %v625, %v641
    %v658 = vadd.f32 %v626, %v641
    %v659 = vadd.f32 %v627, %v645
    %v660 = vadd.f32 %v628, %v645
    %v661 = vadd.f32 %v629, %v645
    %v662 = vadd.f32 %v630, %v645
    %v663 = vtanh.pop %v647
    %v664 = vtanh.pop %v648
    %v665 = vtanh.pop %v649
    %v666 = vtanh.pop %v650
    %v667 = vtanh.pop %v651
    %v668 = vtanh.pop %v652
    %v669 = vtanh.pop %v653
    %v670 = vtanh.pop %v654
    %v671 = vtanh.pop %v655
    %v672 = vtanh.pop %v656
    %v673 = vtanh.pop %v657
    %v674 = vtanh.pop %v658
    %v675 = vtanh.pop %v659
    %v676 = vtanh.pop %v660
    %v677 = vtanh.pop %v661
    %v678 = vtanh.pop %v662
    %679 = vset.pattern.permute.xlu0 10
    %680 = vperm.xlu0 %679, %v577
    %v681 = vpop.permute.xlu0 %680
    %683 = vset.pattern.permute.xlu0 10
    %684 = vperm.xlu0 %683, %v578
    %v685 = vpop.permute.xlu0 %684
    %687 = vset.pattern.permute.xlu0 10
    %688 = vperm.xlu0 %687, %v579
    %v689 = vpop.permute.xlu0 %688
    %691 = vset.pattern.permute.xlu0 10
    %692 = vperm.xlu0 %691, %v580
    %v693 = vpop.permute.xlu0 %692
    %vm695 = vcmask 261120
    %v697 = vsel %vm695, %v582, 0
    %v700 = vsel %vm695, %v583, 0
    %v703 = vsel %vm695, %v584, 0
    %v706 = vsel %vm695, %v585, 0
    %708 = vmatprep.subr.mxu0 %v664
    %709 = vmatpush1.msra.mxu0 %v663
    %710 = vmatprep.subr.mxu0 %v668
    %711 = vmatpush1.msra.mxu0 %v667
    %712 = vmatprep.subr.mxu0 %v672
    %713 = vmatpush1.msra.mxu0 %v671
    %714 = vmatprep.subr.mxu0 %v676
    %715 = vmatpush1.msra.mxu0 %v675
    %716 = vmatprep.subr.mxu0 0.0
    %717 = vmatpush1.msra.mxu0 0.0
    %718 = vmatprep.subr.mxu0 0.0
    %719 = vmatpush1.msra.mxu0 0.0
    %720 = vmatprep.subr.mxu0 0.0
    %721 = vmatpush1.msra.mxu0 0.0
    %722 = vmatprep.subr.mxu0 0.0
    %723 = vmatpush1.msra.mxu0 0.0
    %724 = vmatprep.subr.mxu0 0.0
    %725 = vmatpush1.msra.mxu0 0.0
    %726 = vmatprep.subr.mxu0 0.0
    %727 = vmatpush1.msra.mxu0 0.0
    %728 = vmatprep.subr.mxu0 0.0
    %729 = vmatpush1.msra.mxu0 0.0
    %730 = vmatprep.subr.mxu0 0.0
    %731 = vmatpush1.msra.mxu0 0.0
    %732 = vmatprep.subr.mxu0 0.0
    %733 = vmatpush1.msra.mxu0 0.0
    %734 = vmatprep.subr.mxu0 0.0
    %735 = vmatpush1.msra.mxu0 0.0
    %736 = vmatprep.subr.mxu0 0.0
    %737 = vmatpush1.msra.mxu0 0.0
    %738 = vmatprep.subr.mxu0 0.0
    %739 = vmatpush1.msra.mxu0 0.0
    %740 = vmatprep.subr.mxu0 0.0
    %741 = vmatpush1.msra.mxu0 0.0
    %742 = vmatprep.subr.mxu0 0.0
    %743 = vmatpush1.msra.mxu0 0.0
    %744 = vmatprep.subr.mxu0 0.0
    %745 = vmatpush1.msra.mxu0 0.0
    %746 = vmatprep.subr.mxu0 0.0
    %747 = vmatpush1.msra.mxu0 0.0
    %748 = vmatprep.subr.mxu0 0.0
    %749 = vmatpush1.msra.mxu0 0.0
    %750 = vmatprep.subr.mxu0 0.0
    %751 = vmatpush1.msra.mxu0 0.0
    %752 = vmatprep.subr.mxu0 0.0
    %753 = vmatpush1.msra.mxu0 0.0
    %754 = vmatprep.subr.mxu0 0.0
    %755 = vmatpush1.msra.mxu0 0.0
    %756 = vmatprep.subr.mxu0 0.0
    %757 = vmatpush1.msra.mxu0 0.0
    %758 = vmatprep.subr.mxu0 0.0
    %759 = vmatpush1.msra.mxu0 0.0
    %760 = vmatprep.subr.mxu0 0.0
    %761 = vmatpush1.msra.mxu0 0.0
    %762 = vmatprep.subr.mxu0 0.0
    %763 = vmatpush1.msra.mxu0 0.0
    %764 = vmatprep.subr.mxu0 0.0
    %765 = vmatpush1.msra.mxu0 0.0
    %766 = vmatprep.subr.mxu0 0.0
    %767 = vmatpush1.msra.mxu0 0.0
    %768 = vmatprep.subr.mxu0 0.0
    %769 = vmatpush1.msra.mxu0 0.0
    %770 = vmatprep.subr.mxu0 0.0
    %771 = vmatpush1.msra.mxu0 0.0
    %772 = vmatprep.mubr.f32.mxu0 0.0
    %773 = vmatmul.mubr.f32.gmra.mrb[0].mxu0 %v697
    %v774 = vpop.f32.mrb[0].mxu0
    %v775 = vadd.f32 %v681, %v774
    %v776 = vpop.f32.mrb[0].mxu0
    %v777 = vadd.f32 %v681, %v776
    %778 = vmatprep.mubr.f32.mxu0 0.0
    %779 = vmatmul.mubr.f32.gmra.mrb[0].mxu0 %v700
    %v780 = vpop.f32.mrb[0].mxu0
    %v781 = vadd.f32 %v685, %v780
    %v782 = vpop.f32.mrb[0].mxu0
    %v783 = vadd.f32 %v685, %v782
    %784 = vmatprep.mubr.f32.mxu0 0.0
    %785 = vmatmul.mubr.f32.gmra.mrb[0].mxu0 %v703
    %v786 = vpop.f32.mrb[0].mxu0
    %v787 = vadd.f32 %v689, %v786
    %v788 = vpop.f32.mrb[0].mxu0
    %v789 = vadd.f32 %v689, %v788
    %790 = vmatprep.mubr.f32.mxu0 0.0
    %791 = vmatmul.mubr.f32.gmra.mrb[0].mxu0 %v706
    %v792 = vpop.f32.mrb[0].mxu0
    %v793 = vadd.f32 %v693, %v792
    %v794 = vpop.f32.mrb[0].mxu0
    %v795 = vadd.f32 %v693, %v794
    %796 = vdwg.mxu0
    %797 = vmatprep.subr.mxu0 %v666
    %798 = vmatpush1.msra.mxu0 %v665
    %799 = vmatprep.subr.mxu0 %v670
    %800 = vmatpush1.msra.mxu0 %v669
    %801 = vmatprep.subr.mxu0 %v674
    %802 = vmatpush1.msra.mxu0 %v673
    %803 = vmatprep.subr.mxu0 %v678
    %804 = vmatpush1.msra.mxu0 %v677
    %805 = vmatprep.subr.mxu0 0.0
    %806 = vmatpush1.msra.mxu0 0.0
    %807 = vmatprep.subr.mxu0 0.0
    %808 = vmatpush1.msra.mxu0 0.0
    %809 = vmatprep.subr.mxu0 0.0
    %810 = vmatpush1.msra.mxu0 0.0
    %811 = vmatprep.subr.mxu0 0.0
    %812 = vmatpush1.msra.mxu0 0.0
    %813 = vmatprep.subr.mxu0 0.0
    %814 = vmatpush1.msra.mxu0 0.0
    %815 = vmatprep.subr.mxu0 0.0
    %816 = vmatpush1.msra.mxu0 0.0
    %817 = vmatprep.subr.mxu0 0.0
    %818 = vmatpush1.msra.mxu0 0.0
    %819 = vmatprep.subr.mxu0 0.0
    %820 = vmatpush1.msra.mxu0 0.0
    %821 = vmatprep.subr.mxu0 0.0
    %822 = vmatpush1.msra.mxu0 0.0
    %823 = vmatprep.subr.mxu0 0.0
    %824 = vmatpush1.msra.mxu0 0.0
    %825 = vmatprep.subr.mxu0 0.0
    %826 = vmatpush1.msra.mxu0 0.0
    %827 = vmatprep.subr.mxu0 0.0
    %828 = vmatpush1.msra.mxu0 0.0
    %829 = vmatprep.subr.mxu0 0.0
    %830 = vmatpush1.msra.mxu0 0.0
    %831 = vmatprep.subr.mxu0 0.0
    %832 = vmatpush1.msra.mxu0 0.0
    %833 = vmatprep.subr.mxu0 0.0
    %834 = vmatpush1.msra.mxu0 0.0
    %835 = vmatprep.subr.mxu0 0.0
    %836 = vmatpush1.msra.mxu0 0.0
    %837 = vmatprep.subr.mxu0 0.0
    %838 = vmatpush1.msra.mxu0 0.0
    %839 = vmatprep.subr.mxu0 0.0
    %840 = vmatpush1.msra.mxu0 0.0
    %841 = vmatprep.subr.mxu0 0.0
    %842 = vmatpush1.msra.mxu0 0.0
    %843 = vmatprep.subr.mxu0 0.0
    %844 = vmatpush1.msra.mxu0 0.0
    %845 = vmatprep.subr.mxu0 0.0
    %846 = vmatpush1.msra.mxu0 0.0
    %847 = vmatprep.subr.mxu0 0.0
    %848 = vmatpush1.msra.mxu0 0.0
    %849 = vmatprep.subr.mxu0 0.0
    %850 = vmatpush1.msra.mxu0 0.0
    %851 = vmatprep.subr.mxu0 0.0
    %852 = vmatpush1.msra.mxu0 0.0
    %853 = vmatprep.subr.mxu0 0.0
    %854 = vmatpush1.msra.mxu0 0.0
    %855 = vmatprep.subr.mxu0 0.0
    %856 = vmatpush1.msra.mxu0 0.0
    %857 = vmatprep.subr.mxu0 0.0
    %858 = vmatpush1.msra.mxu0 0.0
    %859 = vmatprep.subr.mxu0 0.0
    %860 = vmatpush1.msra.mxu0 0.0
    %861 = vmatprep.mubr.f32.mxu0 0.0
    %862 = vmatmul.mubr.f32.gmra.mrb[0].mxu0 %v697
    %v863 = vpop.f32.mrb[0].mxu0
    %v864 = vadd.f32 %v681, %v863
    %v865 = vpop.f32.mrb[0].mxu0
    %v866 = vadd.f32 %v681, %v865
    %867 = vmatprep.mubr.f32.mxu0 0.0
    %868 = vmatmul.mubr.f32.gmra.mrb[0].mxu0 %v700
    %v869 = vpop.f32.mrb[0].mxu0
    %v870 = vadd.f32 %v685, %v869
    %v871 = vpop.f32.mrb[0].mxu0
    %v872 = vadd.f32 %v685, %v871
    %873 = vmatprep.mubr.f32.mxu0 0.0
    %874 = vmatmul.mubr.f32.gmra.mrb[0].mxu0 %v703
    %v875 = vpop.f32.mrb[0].mxu0
    %v876 = vadd.f32 %v689, %v875
    %v877 = vpop.f32.mrb[0].mxu0
    %v878 = vadd.f32 %v689, %v877
    %879 = vmatprep.mubr.f32.mxu0 0.0
    %880 = vmatmul.mubr.f32.gmra.mrb[0].mxu0 %v706
    %v881 = vpop.f32.mrb[0].mxu0
    %v882 = vadd.f32 %v693, %v881
    %v883 = vpop.f32.mrb[0].mxu0
    %v884 = vadd.f32 %v693, %v883
    %885 = vdwg.mxu0
    %v886 = vtanh.pop %v775
    %v887 = vtanh.pop %v777
    %v888 = vtanh.pop %v864
    %v889 = vtanh.pop %v866
    %v890 = vtanh.pop %v781
    %v891 = vtanh.pop %v783
    %v892 = vtanh.pop %v870
    %v893 = vtanh.pop %v872
    %v894 = vtanh.pop %v787
    %v895 = vtanh.pop %v789
    %v896 = vtanh.pop %v876
    %v897 = vtanh.pop %v878
    %v898 = vtanh.pop %v793
    %v899 = vtanh.pop %v795
    %v900 = vtanh.pop %v882
    %v901 = vtanh.pop %v884
    %902 = vset.pattern.permute.xlu0 11
    %903 = vperm.xlu0 %902, %v577
    %v904 = vpop.permute.xlu0 %903
    %906 = vset.pattern.permute.xlu0 11
    %907 = vperm.xlu0 %906, %v578
    %v908 = vpop.permute.xlu0 %907
    %910 = vset.pattern.permute.xlu0 11
    %911 = vperm.xlu0 %910, %v579
    %v912 = vpop.permute.xlu0 %911
    %914 = vset.pattern.permute.xlu0 11
    %915 = vperm.xlu0 %914, %v580
    %v916 = vpop.permute.xlu0 %915
    %v919 = vsel %vm695, %v586, 0
    %v922 = vsel %vm695, %v587, 0
    %v925 = vsel %vm695, %v588, 0
    %v928 = vsel %vm695, %v589, 0
    %930 = vmatprep.subr.mxu0 %v887
    %931 = vmatpush1.msra.mxu0 %v886
    %932 = vmatprep.subr.mxu0 %v891
    %933 = vmatpush1.msra.mxu0 %v890
    %934 = vmatprep.subr.mxu0 %v895
    %935 = vmatpush1.msra.mxu0 %v894
    %936 = vmatprep.subr.mxu0 %v899
    %937 = vmatpush1.msra.mxu0 %v898
    %938 = vmatprep.subr.mxu0 0.0
    %939 = vmatpush1.msra.mxu0 0.0
    %940 = vmatprep.subr.mxu0 0.0
    %941 = vmatpush1.msra.mxu0 0.0
    %942 = vmatprep.subr.mxu0 0.0
    %943 = vmatpush1.msra.mxu0 0.0
    %944 = vmatprep.subr.mxu0 0.0
    %945 = vmatpush1.msra.mxu0 0.0
    %946 = vmatprep.subr.mxu0 0.0
    %947 = vmatpush1.msra.mxu0 0.0
    %948 = vmatprep.subr.mxu0 0.0
    %949 = vmatpush1.msra.mxu0 0.0
    %950 = vmatprep.subr.mxu0 0.0
    %951 = vmatpush1.msra.mxu0 0.0
    %952 = vmatprep.subr.mxu0 0.0
    %953 = vmatpush1.msra.mxu0 0.0
    %954 = vmatprep.subr.mxu0 0.0
    %955 = vmatpush1.msra.mxu0 0.0
    %956 = vmatprep.subr.mxu0 0.0
    %957 = vmatpush1.msra.mxu0 0.0
    %958 = vmatprep.subr.mxu0 0.0
    %959 = vmatpush1.msra.mxu0 0.0
    %960 = vmatprep.subr.mxu0 0.0
    %961 = vmatpush1.msra.mxu0 0.0
    %962 = vmatprep.subr.mxu0 0.0
    %963 = vmatpush1.msra.mxu0 0.0
    %964 = vmatprep.subr.mxu0 0.0
    %965 = vmatpush1.msra.mxu0 0.0
    %966 = vmatprep.subr.mxu0 0.0
    %967 = vmatpush1.msra.mxu0 0.0
    %968 = vmatprep.subr.mxu0 0.0
    %969 = vmatpush1.msra.mxu0 0.0
    %970 = vmatprep.subr.mxu0 0.0
    %971 = vmatpush1.msra.mxu0 0.0
    %972 = vmatprep.subr.mxu0 0.0
    %973 = vmatpush1.msra.mxu0 0.0
    %974 = vmatprep.subr.mxu0 0.0
    %975 = vmatpush1.msra.mxu0 0.0
    %976 = vmatprep.subr.mxu0 0.0
    %977 = vmatpush1.msra.mxu0 0.0
    %978 = vmatprep.subr.mxu0 0.0
    %979 = vmatpush1.msra.mxu0 0.0
    %980 = vmatprep.subr.mxu0 0.0
    %981 = vmatpush1.msra.mxu0 0.0
    %982 = vmatprep.subr.mxu0 0.0
    %983 = vmatpush1.msra.mxu0 0.0
    %984 = vmatprep.subr.mxu0 0.0
    %985 = vmatpush1.msra.mxu0 0.0
    %986 = vmatprep.subr.mxu0 0.0
    %987 = vmatpush1.msra.mxu0 0.0
    %988 = vmatprep.subr.mxu0 0.0
    %989 = vmatpush1.msra.mxu0 0.0
    %990 = vmatprep.subr.mxu0 0.0
    %991 = vmatpush1.msra.mxu0 0.0
    %992 = vmatprep.subr.mxu0 0.0
    %993 = vmatpush1.msra.mxu0 0.0
    %994 = vmatprep.mubr.f32.mxu0 0.0
    %995 = vmatmul.mubr.f32.gmra.mrb[0].mxu0 %v919
    %v996 = vpop.f32.mrb[0].mxu0
    %v997 = vadd.f32 %v904, %v996
    %v998 = vpop.f32.mrb[0].mxu0
    %v999 = vadd.f32 %v904, %v998
    %1000 = vmatprep.mubr.f32.mxu0 0.0
    %1001 = vmatmul.mubr.f32.gmra.mrb[0].mxu0 %v922
    %v1002 = vpop.f32.mrb[0].mxu0
    %v1003 = vadd.f32 %v908, %v1002
    %v1004 = vpop.f32.mrb[0].mxu0
    %v1005 = vadd.f32 %v908, %v1004
    %1006 = vmatprep.mubr.f32.mxu0 0.0
    %1007 = vmatmul.mubr.f32.gmra.mrb[0].mxu0 %v925
    %v1008 = vpop.f32.mrb[0].mxu0
    %v1009 = vadd.f32 %v912, %v1008
    %v1010 = vpop.f32.mrb[0].mxu0
    %v1011 = vadd.f32 %v912, %v1010
    %1012 = vmatprep.mubr.f32.mxu0 0.0
    %1013 = vmatmul.mubr.f32.gmra.mrb[0].mxu0 %v928
    %v1014 = vpop.f32.mrb[0].mxu0
    %v1015 = vadd.f32 %v916, %v1014
    %v1016 = vpop.f32.mrb[0].mxu0
    %v1017 = vadd.f32 %v916, %v1016
    %1018 = vdwg.mxu0
    %1019 = vmatprep.subr.mxu0 %v889
    %1020 = vmatpush1.msra.mxu0 %v888
    %1021 = vmatprep.subr.mxu0 %v893
    %1022 = vmatpush1.msra.mxu0 %v892
    %1023 = vmatprep.subr.mxu0 %v897
    %1024 = vmatpush1.msra.mxu0 %v896
    %1025 = vmatprep.subr.mxu0 %v901
    %1026 = vmatpush1.msra.mxu0 %v900
    %1027 = vmatprep.subr.mxu0 0.0
    %1028 = vmatpush1.msra.mxu0 0.0
    %1029 = vmatprep.subr.mxu0 0.0
    %1030 = vmatpush1.msra.mxu0 0.0
    %1031 = vmatprep.subr.mxu0 0.0
    %1032 = vmatpush1.msra.mxu0 0.0
    %1033 = vmatprep.subr.mxu0 0.0
    %1034 = vmatpush1.msra.mxu0 0.0
    %1035 = vmatprep.subr.mxu0 0.0
    %1036 = vmatpush1.msra.mxu0 0.0
    %1037 = vmatprep.subr.mxu0 0.0
    %1038 = vmatpush1.msra.mxu0 0.0
    %1039 = vmatprep.subr.mxu0 0.0
    %1040 = vmatpush1.msra.mxu0 0.0
    %1041 = vmatprep.subr.mxu0 0.0
    %1042 = vmatpush1.msra.mxu0 0.0
    %1043 = vmatprep.subr.mxu0 0.0
    %1044 = vmatpush1.msra.mxu0 0.0
    %1045 = vmatprep.subr.mxu0 0.0
    %1046 = vmatpush1.msra.mxu0 0.0
    %1047 = vmatprep.subr.mxu0 0.0
    %1048 = vmatpush1.msra.mxu0 0.0
    %1049 = vmatprep.subr.mxu0 0.0
    %1050 = vmatpush1.msra.mxu0 0.0
    %1051 = vmatprep.subr.mxu0 0.0
    %1052 = vmatpush1.msra.mxu0 0.0
    %1053 = vmatprep.subr.mxu0 0.0
    %1054 = vmatpush1.msra.mxu0 0.0
    %1055 = vmatprep.subr.mxu0 0.0
    %1056 = vmatpush1.msra.mxu0 0.0
    %1057 = vmatprep.subr.mxu0 0.0
    %1058 = vmatpush1.msra.mxu0 0.0
    %1059 = vmatprep.subr.mxu0 0.0
    %1060 = vmatpush1.msra.mxu0 0.0
    %1061 = vmatprep.subr.mxu0 0.0
    %1062 = vmatpush1.msra.mxu0 0.0
    %1063 = vmatprep.subr.mxu0 0.0
    %1064 = vmatpush1.msra.mxu0 0.0
    %1065 = vmatprep.subr.mxu0 0.0
    %1066 = vmatpush1.msra.mxu0 0.0
    %1067 = vmatprep.subr.mxu0 0.0
    %1068 = vmatpush1.msra.mxu0 0.0
    %1069 = vmatprep.subr.mxu0 0.0
    %1070 = vmatpush1.msra.mxu0 0.0
    %1071 = vmatprep.subr.mxu0 0.0
    %1072 = vmatpush1.msra.mxu0 0.0
    %1073 = vmatprep.subr.mxu0 0.0
    %1074 = vmatpush1.msra.mxu0 0.0
    %1075 = vmatprep.subr.mxu0 0.0
    %1076 = vmatpush1.msra.mxu0 0.0
    %1077 = vmatprep.subr.mxu0 0.0
    %1078 = vmatpush1.msra.mxu0 0.0
    %1079 = vmatprep.subr.mxu0 0.0
    %1080 = vmatpush1.msra.mxu0 0.0
    %1081 = vmatprep.subr.mxu0 0.0
    %1082 = vmatpush1.msra.mxu0 0.0
    %1083 = vmatprep.mubr.f32.mxu0 0.0
    %1084 = vmatmul.mubr.f32.gmra.mrb[0].mxu0 %v919
    %v1085 = vpop.f32.mrb[0].mxu0
    %v1086 = vadd.f32 %v904, %v1085
    %v1087 = vpop.f32.mrb[0].mxu0
    %v1088 = vadd.f32 %v904, %v1087
    %1089 = vmatprep.mubr.f32.mxu0 0.0
    %1090 = vmatmul.mubr.f32.gmra.mrb[0].mxu0 %v922
    %v1091 = vpop.f32.mrb[0].mxu0
    %v1092 = vadd.f32 %v908, %v1091
    %v1093 = vpop.f32.mrb[0].mxu0
    %v1094 = vadd.f32 %v908, %v1093
    %1095 = vmatprep.mubr.f32.mxu0 0.0
    %1096 = vmatmul.mubr.f32.gmra.mrb[0].mxu0 %v925
    %v1097 = vpop.f32.mrb[0].mxu0
    %v1098 = vadd.f32 %v912, %v1097
    %v1099 = vpop.f32.mrb[0].mxu0
    %v1100 = vadd.f32 %v912, %v1099
    %1101 = vmatprep.mubr.f32.mxu0 0.0
    %1102 = vmatmul.mubr.f32.gmra.mrb[0].mxu0 %v928
    %v1103 = vpop.f32.mrb[0].mxu0
    %v1104 = vadd.f32 %v916, %v1103
    %v1105 = vpop.f32.mrb[0].mxu0
    %v1106 = vadd.f32 %v916, %v1105
    %1107 = vdwg.mxu0
    %v1108 = vtanh.pop %v997
    %v1109 = vtanh.pop %v999
    %v1110 = vtanh.pop %v1086
    %v1111 = vtanh.pop %v1088
    %v1112 = vtanh.pop %v1003
    %v1113 = vtanh.pop %v1005
    %v1114 = vtanh.pop %v1092
    %v1115 = vtanh.pop %v1094
    %v1116 = vtanh.pop %v1009
    %v1117 = vtanh.pop %v1011
    %v1118 = vtanh.pop %v1098
    %v1119 = vtanh.pop %v1100
    %v1120 = vtanh.pop %v1015
    %v1121 = vtanh.pop %v1017
    %v1122 = vtanh.pop %v1104
    %v1123 = vtanh.pop %v1106
    %1124 = vset.pattern.permute.xlu0 12
    %1125 = vperm.xlu0 %1124, %v577
    %v1126 = vpop.permute.xlu0 %1125
    %1128 = vset.pattern.permute.xlu0 12
    %1129 = vperm.xlu0 %1128, %v578
    %v1130 = vpop.permute.xlu0 %1129
    %1132 = vset.pattern.permute.xlu0 12
    %1133 = vperm.xlu0 %1132, %v579
    %v1134 = vpop.permute.xlu0 %1133
    %1136 = vset.pattern.permute.xlu0 12
    %1137 = vperm.xlu0 %1136, %v580
    %v1138 = vpop.permute.xlu0 %1137
    %v1141 = vsel %vm695, %v590, 0
    %v1144 = vsel %vm695, %v591, 0
    %v1147 = vsel %vm695, %v592, 0
    %v1150 = vsel %vm695, %v593, 0
    %1152 = vmatprep.subr.mxu0 %v1109
    %1153 = vmatpush1.msra.mxu0 %v1108
    %1154 = vmatprep.subr.mxu0 %v1113
    %1155 = vmatpush1.msra.mxu0 %v1112
    %1156 = vmatprep.subr.mxu0 %v1117
    %1157 = vmatpush1.msra.mxu0 %v1116
    %1158 = vmatprep.subr.mxu0 %v1121
    %1159 = vmatpush1.msra.mxu0 %v1120
    %1160 = vmatprep.subr.mxu0 0.0
    %1161 = vmatpush1.msra.mxu0 0.0
    %1162 = vmatprep.subr.mxu0 0.0
    %1163 = vmatpush1.msra.mxu0 0.0
    %1164 = vmatprep.subr.mxu0 0.0
    %1165 = vmatpush1.msra.mxu0 0.0
    %1166 = vmatprep.subr.mxu0 0.0
    %1167 = vmatpush1.msra.mxu0 0.0
    %1168 = vmatprep.subr.mxu0 0.0
    %1169 = vmatpush1.msra.mxu0 0.0
    %1170 = vmatprep.subr.mxu0 0.0
    %1171 = vmatpush1.msra.mxu0 0.0
    %1172 = vmatprep.subr.mxu0 0.0
    %1173 = vmatpush1.msra.mxu0 0.0
    %1174 = vmatprep.subr.mxu0 0.0
    %1175 = vmatpush1.msra.mxu0 0.0
    %1176 = vmatprep.subr.mxu0 0.0
    %1177 = vmatpush1.msra.mxu0 0.0
    %1178 = vmatprep.subr.mxu0 0.0
    %1179 = vmatpush1.msra.mxu0 0.0
    %1180 = vmatprep.subr.mxu0 0.0
    %1181 = vmatpush1.msra.mxu0 0.0
    %1182 = vmatprep.subr.mxu0 0.0
    %1183 = vmatpush1.msra.mxu0 0.0
    %1184 = vmatprep.subr.mxu0 0.0
    %1185 = vmatpush1.msra.mxu0 0.0
    %1186 = vmatprep.subr.mxu0 0.0
    %1187 = vmatpush1.msra.mxu0 0.0
    %1188 = vmatprep.subr.mxu0 0.0
    %1189 = vmatpush1.msra.mxu0 0.0
    %1190 = vmatprep.subr.mxu0 0.0
    %1191 = vmatpush1.msra.mxu0 0.0
    %1192 = vmatprep.subr.mxu0 0.0
    %1193 = vmatpush1.msra.mxu0 0.0
    %1194 = vmatprep.subr.mxu0 0.0
    %1195 = vmatpush1.msra.mxu0 0.0
    %1196 = vmatprep.subr.mxu0 0.0
    %1197 = vmatpush1.msra.mxu0 0.0
    %1198 = vmatprep.subr.mxu0 0.0
    %1199 = vmatpush1.msra.mxu0 0.0
    %1200 = vmatprep.subr.mxu0 0.0
    %1201 = vmatpush1.msra.mxu0 0.0
    %1202 = vmatprep.subr.mxu0 0.0
    %1203 = vmatpush1.msra.mxu0 0.0
    %1204 = vmatprep.subr.mxu0 0.0
    %1205 = vmatpush1.msra.mxu0 0.0
    %1206 = vmatprep.subr.mxu0 0.0
    %1207 = vmatpush1.msra.mxu0 0.0
    %1208 = vmatprep.subr.mxu0 0.0
    %1209 = vmatpush1.msra.mxu0 0.0
    %1210 = vmatprep.subr.mxu0 0.0
    %1211 = vmatpush1.msra.mxu0 0.0
    %1212 = vmatprep.subr.mxu0 0.0
    %1213 = vmatpush1.msra.mxu0 0.0
    %1214 = vmatprep.subr.mxu0 0.0
    %1215 = vmatpush1.msra.mxu0 0.0
    %1216 = vmatprep.mubr.f32.mxu0 0.0
    %1217 = vmatmul.mubr.f32.gmra.mrb[0].mxu0 %v1141
    %v1218 = vpop.f32.mrb[0].mxu0
    %v1219 = vadd.f32 %v1126, %v1218
    %v1220 = vpop.f32.mrb[0].mxu0
    %v1221 = vadd.f32 %v1126, %v1220
    %1222 = vmatprep.mubr.f32.mxu0 0.0
    %1223 = vmatmul.mubr.f32.gmra.mrb[0].mxu0 %v1144
    %v1224 = vpop.f32.mrb[0].mxu0
    %v1225 = vadd.f32 %v1130, %v1224
    %v1226 = vpop.f32.mrb[0].mxu0
    %v1227 = vadd.f32 %v1130, %v1226
    %1228 = vmatprep.mubr.f32.mxu0 0.0
    %1229 = vmatmul.mubr.f32.gmra.mrb[0].mxu0 %v1147
    %v1230 = vpop.f32.mrb[0].mxu0
    %v1231 = vadd.f32 %v1134, %v1230
    %v1232 = vpop.f32.mrb[0].mxu0
    %v1233 = vadd.f32 %v1134, %v1232
    %1234 = vmatprep.mubr.f32.mxu0 0.0
    %1235 = vmatmul.mubr.f32.gmra.mrb[0].mxu0 %v1150
    %v1236 = vpop.f32.mrb[0].mxu0
    %v1237 = vadd.f32 %v1138, %v1236
    %v1238 = vpop.f32.mrb[0].mxu0
    %v1239 = vadd.f32 %v1138, %v1238
    %1240 = vdwg.mxu0
    %1241 = vmatprep.subr.mxu0 %v1111
    %1242 = vmatpush1.msra.mxu0 %v1110
    %1243 = vmatprep.subr.mxu0 %v1115
    %1244 = vmatpush1.msra.mxu0 %v1114
    %1245 = vmatprep.subr.mxu0 %v1119
    %1246 = vmatpush1.msra.mxu0 %v1118
    %1247 = vmatprep.subr.mxu0 %v1123
    %1248 = vmatpush1.msra.mxu0 %v1122
    %1249 = vmatprep.subr.mxu0 0.0
    %1250 = vmatpush1.msra.mxu0 0.0
    %1251 = vmatprep.subr.mxu0 0.0
    %1252 = vmatpush1.msra.mxu0 0.0
    %1253 = vmatprep.subr.mxu0 0.0
    %1254 = vmatpush1.msra.mxu0 0.0
    %1255 = vmatprep.subr.mxu0 0.0
    %1256 = vmatpush1.msra.mxu0 0.0
    %1257 = vmatprep.subr.mxu0 0.0
    %1258 = vmatpush1.msra.mxu0 0.0
    %1259 = vmatprep.subr.mxu0 0.0
    %1260 = vmatpush1.msra.mxu0 0.0
    %1261 = vmatprep.subr.mxu0 0.0
    %1262 = vmatpush1.msra.mxu0 0.0
    %1263 = vmatprep.subr.mxu0 0.0
    %1264 = vmatpush1.msra.mxu0 0.0
    %1265 = vmatprep.subr.mxu0 0.0
    %1266 = vmatpush1.msra.mxu0 0.0
    %1267 = vmatprep.subr.mxu0 0.0
    %1268 = vmatpush1.msra.mxu0 0.0
    %1269 = vmatprep.subr.mxu0 0.0
    %1270 = vmatpush1.msra.mxu0 0.0
    %1271 = vmatprep.subr.mxu0 0.0
    %1272 = vmatpush1.msra.mxu0 0.0
    %1273 = vmatprep.subr.mxu0 0.0
    %1274 = vmatpush1.msra.mxu0 0.0
    %1275 = vmatprep.subr.mxu0 0.0
    %1276 = vmatpush1.msra.mxu0 0.0
    %1277 = vmatprep.subr.mxu0 0.0
    %1278 = vmatpush1.msra.mxu0 0.0
    %1279 = vmatprep.subr.mxu0 0.0
    %1280 = vmatpush1.msra.mxu0 0.0
    %1281 = vmatprep.subr.mxu0 0.0
    %1282 = vmatpush1.msra.mxu0 0.0
    %1283 = vmatprep.subr.mxu0 0.0
    %1284 = vmatpush1.msra.mxu0 0.0
    %1285 = vmatprep.subr.mxu0 0.0
    %1286 = vmatpush1.msra.mxu0 0.0
    %1287 = vmatprep.subr.mxu0 0.0
    %1288 = vmatpush1.msra.mxu0 0.0
    %1289 = vmatprep.subr.mxu0 0.0
    %1290 = vmatpush1.msra.mxu0 0.0
    %1291 = vmatprep.subr.mxu0 0.0
    %1292 = vmatpush1.msra.mxu0 0.0
    %1293 = vmatprep.subr.mxu0 0.0
    %1294 = vmatpush1.msra.mxu0 0.0
    %1295 = vmatprep.subr.mxu0 0.0
    %1296 = vmatpush1.msra.mxu0 0.0
    %1297 = vmatprep.subr.mxu0 0.0
    %1298 = vmatpush1.msra.mxu0 0.0
    %1299 = vmatprep.subr.mxu0 0.0
    %1300 = vmatpush1.msra.mxu0 0.0
    %1301 = vmatprep.subr.mxu0 0.0
    %1302 = vmatpush1.msra.mxu0 0.0
    %1303 = vmatprep.subr.mxu0 0.0
    %1304 = vmatpush1.msra.mxu0 0.0
    %1305 = vmatprep.mubr.f32.mxu0 0.0
    %1306 = vmatmul.mubr.f32.gmra.mrb[0].mxu0 %v1141
    %v1307 = vpop.f32.mrb[0].mxu0
    %v1308 = vadd.f32 %v1126, %v1307
    %v1309 = vpop.f32.mrb[0].mxu0
    %v1310 = vadd.f32 %v1126, %v1309
    %1311 = vmatprep.mubr.f32.mxu0 0.0
    %1312 = vmatmul.mubr.f32.gmra.mrb[0].mxu0 %v1144
    %v1313 = vpop.f32.mrb[0].mxu0
    %v1314 = vadd.f32 %v1130, %v1313
    %v1315 = vpop.f32.mrb[0].mxu0
    %v1316 = vadd.f32 %v1130, %v1315
    %1317 = vmatprep.mubr.f32.mxu0 0.0
    %1318 = vmatmul.mubr.f32.gmra.mrb[0].mxu0 %v1147
    %v1319 = vpop.f32.mrb[0].mxu0
    %v1320 = vadd.f32 %v1134, %v1319
    %v1321 = vpop.f32.mrb[0].mxu0
    %v1322 = vadd.f32 %v1134, %v1321
    %1323 = vmatprep.mubr.f32.mxu0 0.0
    %1324 = vmatmul.mubr.f32.gmra.mrb[0].mxu0 %v1150
    %v1325 = vpop.f32.mrb[0].mxu0
    %v1326 = vadd.f32 %v1138, %v1325
    %v1327 = vpop.f32.mrb[0].mxu0
    %v1328 = vadd.f32 %v1138, %v1327
    %1329 = vdwg.mxu0
    %v1330 = vmax.f32 %v1219, 0.0
    %v1331 = vmax.f32 %v1221, 0.0
    %v1332 = vmax.f32 %v1308, 0.0
    %v1333 = vmax.f32 %v1310, 0.0
    %v1334 = vmax.f32 %v1225, 0.0
    %v1335 = vmax.f32 %v1227, 0.0
    %v1336 = vmax.f32 %v1314, 0.0
    %v1337 = vmax.f32 %v1316, 0.0
    %v1338 = vmax.f32 %v1231, 0.0
    %v1339 = vmax.f32 %v1233, 0.0
    %v1340 = vmax.f32 %v1320, 0.0
    %v1341 = vmax.f32 %v1322, 0.0
    %v1342 = vmax.f32 %v1237, 0.0
    %v1343 = vmax.f32 %v1239, 0.0
    %v1344 = vmax.f32 %v1326, 0.0
    %v1345 = vmax.f32 %v1328, 0.0
    %1347 = vset.pattern.permute.xlu0 13
    %1348 = vperm.xlu0 %1347, %v581
    %v1349 = vpop.permute.xlu0 %1348
    %v1352 = vsel %vm695, %v594, 0
    %1354 = vmatprep.subr.mxu0 %v1331
    %1355 = vmatpush1.msra.mxu0 %v1330
    %1356 = vmatprep.subr.mxu0 %v1335
    %1357 = vmatpush1.msra.mxu0 %v1334
    %1358 = vmatprep.subr.mxu0 %v1339
    %1359 = vmatpush1.msra.mxu0 %v1338
    %1360 = vmatprep.subr.mxu0 %v1343
    %1361 = vmatpush1.msra.mxu0 %v1342
    %1362 = vmatprep.subr.mxu0 0.0
    %1363 = vmatpush1.msra.mxu0 0.0
    %1364 = vmatprep.subr.mxu0 0.0
    %1365 = vmatpush1.msra.mxu0 0.0
    %1366 = vmatprep.subr.mxu0 0.0
    %1367 = vmatpush1.msra.mxu0 0.0
    %1368 = vmatprep.subr.mxu0 0.0
    %1369 = vmatpush1.msra.mxu0 0.0
    %1370 = vmatprep.subr.mxu0 0.0
    %1371 = vmatpush1.msra.mxu0 0.0
    %1372 = vmatprep.subr.mxu0 0.0
    %1373 = vmatpush1.msra.mxu0 0.0
    %1374 = vmatprep.subr.mxu0 0.0
    %1375 = vmatpush1.msra.mxu0 0.0
    %1376 = vmatprep.subr.mxu0 0.0
    %1377 = vmatpush1.msra.mxu0 0.0
    %1378 = vmatprep.subr.mxu0 0.0
    %1379 = vmatpush1.msra.mxu0 0.0
    %1380 = vmatprep.subr.mxu0 0.0
    %1381 = vmatpush1.msra.mxu0 0.0
    %1382 = vmatprep.subr.mxu0 0.0
    %1383 = vmatpush1.msra.mxu0 0.0
    %1384 = vmatprep.subr.mxu0 0.0
    %1385 = vmatpush1.msra.mxu0 0.0
    %1386 = vmatprep.subr.mxu0 0.0
    %1387 = vmatpush1.msra.mxu0 0.0
    %1388 = vmatprep.subr.mxu0 0.0
    %1389 = vmatpush1.msra.mxu0 0.0
    %1390 = vmatprep.subr.mxu0 0.0
    %1391 = vmatpush1.msra.mxu0 0.0
    %1392 = vmatprep.subr.mxu0 0.0
    %1393 = vmatpush1.msra.mxu0 0.0
    %1394 = vmatprep.subr.mxu0 0.0
    %1395 = vmatpush1.msra.mxu0 0.0
    %1396 = vmatprep.subr.mxu0 0.0
    %1397 = vmatpush1.msra.mxu0 0.0
    %1398 = vmatprep.subr.mxu0 0.0
    %1399 = vmatpush1.msra.mxu0 0.0
    %1400 = vmatprep.subr.mxu0 0.0
    %1401 = vmatpush1.msra.mxu0 0.0
    %1402 = vmatprep.subr.mxu0 0.0
    %1403 = vmatpush1.msra.mxu0 0.0
    %1404 = vmatprep.subr.mxu0 0.0
    %1405 = vmatpush1.msra.mxu0 0.0
    %1406 = vmatprep.subr.mxu0 0.0
    %1407 = vmatpush1.msra.mxu0 0.0
    %1408 = vmatprep.subr.mxu0 0.0
    %1409 = vmatpush1.msra.mxu0 0.0
    %1410 = vmatprep.subr.mxu0 0.0
    %1411 = vmatpush1.msra.mxu0 0.0
    %1412 = vmatprep.subr.mxu0 0.0
    %1413 = vmatpush1.msra.mxu0 0.0
    %1414 = vmatprep.subr.mxu0 0.0
    %1415 = vmatpush1.msra.mxu0 0.0
    %1416 = vmatprep.subr.mxu0 0.0
    %1417 = vmatpush1.msra.mxu0 0.0
    %1418 = vmatprep.mubr.f32.mxu0 0.0
    %1419 = vmatmul.mubr.f32.gmra.mrb[0].mxu0 %v1352
    %v1420 = vpop.f32.mrb[0].mxu0
    %v1421 = vadd.f32 %v1349, %v1420
    %v1422 = vpop.f32.mrb[0].mxu0
    %v1423 = vadd.f32 %v1349, %v1422
    %1424 = vdwg.mxu0
    %1425 = vmatprep.subr.mxu0 %v1333
    %1426 = vmatpush1.msra.mxu0 %v1332
    %1427 = vmatprep.subr.mxu0 %v1337
    %1428 = vmatpush1.msra.mxu0 %v1336
    %1429 = vmatprep.subr.mxu0 %v1341
    %1430 = vmatpush1.msra.mxu0 %v1340
    %1431 = vmatprep.subr.mxu0 %v1345
    %1432 = vmatpush1.msra.mxu0 %v1344
    %1433 = vmatprep.subr.mxu0 0.0
    %1434 = vmatpush1.msra.mxu0 0.0
    %1435 = vmatprep.subr.mxu0 0.0
    %1436 = vmatpush1.msra.mxu0 0.0
    %1437 = vmatprep.subr.mxu0 0.0
    %1438 = vmatpush1.msra.mxu0 0.0
    %1439 = vmatprep.subr.mxu0 0.0
    %1440 = vmatpush1.msra.mxu0 0.0
    %1441 = vmatprep.subr.mxu0 0.0
    %1442 = vmatpush1.msra.mxu0 0.0
    %1443 = vmatprep.subr.mxu0 0.0
    %1444 = vmatpush1.msra.mxu0 0.0
    %1445 = vmatprep.subr.mxu0 0.0
    %1446 = vmatpush1.msra.mxu0 0.0
    %1447 = vmatprep.subr.mxu0 0.0
    %1448 = vmatpush1.msra.mxu0 0.0
    %1449 = vmatprep.subr.mxu0 0.0
    %1450 = vmatpush1.msra.mxu0 0.0
    %1451 = vmatprep.subr.mxu0 0.0
    %1452 = vmatpush1.msra.mxu0 0.0
    %1453 = vmatprep.subr.mxu0 0.0
    %1454 = vmatpush1.msra.mxu0 0.0
    %1455 = vmatprep.subr.mxu0 0.0
    %1456 = vmatpush1.msra.mxu0 0.0
    %1457 = vmatprep.subr.mxu0 0.0
    %1458 = vmatpush1.msra.mxu0 0.0
    %1459 = vmatprep.subr.mxu0 0.0
    %1460 = vmatpush1.msra.mxu0 0.0
    %1461 = vmatprep.subr.mxu0 0.0
    %1462 = vmatpush1.msra.mxu0 0.0
    %1463 = vmatprep.subr.mxu0 0.0
    %1464 = vmatpush1.msra.mxu0 0.0
    %1465 = vmatprep.subr.mxu0 0.0
    %1466 = vmatpush1.msra.mxu0 0.0
    %1467 = vmatprep.subr.mxu0 0.0
    %1468 = vmatpush1.msra.mxu0 0.0
    %1469 = vmatprep.subr.mxu0 0.0
    %1470 = vmatpush1.msra.mxu0 0.0
    %1471 = vmatprep.subr.mxu0 0.0
    %1472 = vmatpush1.msra.mxu0 0.0
    %1473 = vmatprep.subr.mxu0 0.0
    %1474 = vmatpush1.msra.mxu0 0.0
    %1475 = vmatprep.subr.mxu0 0.0
    %1476 = vmatpush1.msra.mxu0 0.0
    %1477 = vmatprep.subr.mxu0 0.0
    %1478 = vmatpush1.msra.mxu0 0.0
    %1479 = vmatprep.subr.mxu0 0.0
    %1480 = vmatpush1.msra.mxu0 0.0
    %1481 = vmatprep.subr.mxu0 0.0
    %1482 = vmatpush1.msra.mxu0 0.0
    %1483 = vmatprep.subr.mxu0 0.0
    %1484 = vmatpush1.msra.mxu0 0.0
    %1485 = vmatprep.subr.mxu0 0.0
    %1486 = vmatpush1.msra.mxu0 0.0
    %1487 = vmatprep.subr.mxu0 0.0
    %1488 = vmatpush1.msra.mxu0 0.0
    %1489 = vmatprep.mubr.f32.mxu0 0.0
    %1490 = vmatmul.mubr.f32.gmra.mrb[0].mxu0 %v1352
    %v1491 = vpop.f32.mrb[0].mxu0
    %v1492 = vadd.f32 %v1349, %v1491
    %v1493 = vpop.f32.mrb[0].mxu0
    %v1494 = vadd.f32 %v1349, %v1493
    %1495 = vdwg.mxu0
    %v1496 = vmax.f32 %v1421, 0.0
    %v1497 = vmax.f32 %v1423, 0.0
    %v1498 = vmax.f32 %v1492, 0.0
    %v1499 = vmax.f32 %v1494, 0.0
    %v1500 = vmul.f32 %v1496, %v386
    %v1501 = vmul.f32 %v1497, %v388
    %v1502 = vmul.f32 %v1498, %v493
    %v1503 = vmul.f32 %v1499, %v495
    %v1504 = vsel %vm231, %v1500, 0.0
    %v1505 = vrot.slane %v1504, 4
    %v1506 = vadd.f32 %v1504, %v1505
    %v1507 = vrot.slane %v1506, 2
    %v1508 = vadd.f32 %v1506, %v1507
    %v1509 = vrot.slane %v1508, 1
    %v1510 = vadd.f32 %v1508, %v1509
    %v1511 = vsel %vm231, %v1501, 0.0
    %v1512 = vrot.slane %v1511, 4
    %v1513 = vadd.f32 %v1511, %v1512
    %v1514 = vrot.slane %v1513, 2
    %v1515 = vadd.f32 %v1513, %v1514
    %v1516 = vrot.slane %v1515, 1
    %v1517 = vadd.f32 %v1515, %v1516
    %v1518 = vsel %vm231, %v1502, 0.0
    %v1519 = vrot.slane %v1518, 4
    %v1520 = vadd.f32 %v1518, %v1519
    %v1521 = vrot.slane %v1520, 2
    %v1522 = vadd.f32 %v1520, %v1521
    %v1523 = vrot.slane %v1522, 1
    %v1524 = vadd.f32 %v1522, %v1523
    %v1525 = vsel %vm231, %v1503, 0.0
    %v1526 = vrot.slane %v1525, 4
    %v1527 = vadd.f32 %v1525, %v1526
    %v1528 = vrot.slane %v1527, 2
    %v1529 = vadd.f32 %v1527, %v1528
    %v1530 = vrot.slane %v1529, 1
    %v1531 = vadd.f32 %v1529, %v1530
    %v1536 = vcombine.low %v1510, %v1517
    %v1537 = vcombine.low %v1524, %v1531
    %v1539 = vunpack.c.l.s4 1966171168
    %v1540 = vunpack.c.0.s8 %v1539
    %v1541 = vlaneseq
    %v1542 = vshrl.u32 %v1541, 7
    %v1543 = vsub.s32 %v1540, %v1542
    %v1544 = vrot.slane %v1536, %v1543
    %v1546 = vunpack.c.l.s4 1966171168
    %v1547 = vunpack.c.0.s8 %v1546
    %v1548 = vlaneseq
    %v1549 = vshrl.u32 %v1548, 7
    %v1550 = vsub.s32 %v1547, %v1549
    %v1551 = vrot.slane %v1537, %v1550
    %v1552 = vcombine.low %v1544, %v1551
    %v1554 = vunpack.c.l.s4 1966171168
    %v1555 = vunpack.c.0.s8 %v1554
    %v1556 = vlaneseq
    %v1557 = vshrl.u32 %v1556, 7
    %v1558 = vsub.s32 %v1555, %v1557
    %v1559 = vrot.slane %v1552, %v1558
    %v1561 = vlaneseq
    %vm1562 = vcmp.ge.s32.totalorder %v1561, 0
    %vm1563 = vcmp.lt.s32.totalorder %v1561, 512
    %vm1564 = vmand %vm1562, %vm1563
    %1565 = vst.msk [vmem:[#allocation8] sm:$0xf] %vm1564, %v1559
    // Predicated region
    $region26: #{tpu_custom_call.1} parent=1 // pred_check
      _
    $region27: #{tpu_custom_call.1} parent=1 // pred_check_branch
      %1567 = sbr.rel (0) target = $region29
    $region28: #{tpu_custom_call.1} parent=1 // pred_region
      %s1569 = ssub.s32 64, 64
      %1570 = vsyncadd [#allocation4], %s1569
      %s1572 = sshll.u32 [#allocation8], 4
      %s1573 = int_to_ptr.vmem [resolvable:$true] %s1572
      %1575 = dma.vmem_to_hbm [thread:$0]  %s1573, 64, %s3, [#allocation4]
    $region29: #{tpu_custom_call.1} parent=1 // pred_fallthru
      _
    // Predicated region
    $region30: #{tpu_custom_call.1} parent=1 // pred_check
      _
    $region31: #{tpu_custom_call.1} parent=1 // pred_check_branch
      %1577 = sbr.rel (0) target = $region33
    $region32: #{tpu_custom_call.1} parent=1 // pred_region
      %1578 = dma.done [#allocation4], 64
    $region33: #{tpu_custom_call.1} parent=1 // pred_fallthru
      _
    %1579 = vsyncpa [#allocation3], 1
    %1580 = vsyncpa [#allocation6], 1
    %1581 = vsyncpa [#allocation4], 1

</llo_original>
